<compile_context>
chip_gen: v6e
topology: v6e:2x2x1
jax: 0.10.0
libtpu: 0.0.40
codegen_flags: <defaults>
</compile_context>

<pallas_src>
import functools

import jax
import jax.numpy as jnp
from jax.experimental import pallas as pl
from jax.experimental.pallas import tpu as pltpu


# ----------------------------------------------------------------------------
# helpers (mirror the PyTorch module)
# ----------------------------------------------------------------------------
def _make_divisible(v, divisor=8, min_value=None):
    if min_value is None:
        min_value = divisor
    new_v = max(min_value, int(v + divisor / 2) // divisor * divisor)
    if new_v < 0.9 * v:
        new_v += divisor
    return int(new_v)


def _hswish(x):
    # x * relu6(x + 3) / 6
    return x * (jnp.clip(x + 3.0, 0.0, 6.0) * (1.0 / 6.0))


def _relu6(x):
    return jnp.clip(x, 0.0, 6.0)


def _act(x, act):
    if act == "relu6":
        return _relu6(x)
    return _hswish(x)


def _round_up(v, m):
    return ((v + m - 1) // m) * m


# ----------------------------------------------------------------------------
# fused kernel: expand 1x1 -> depthwise kxk -> SE -> project 1x1 (+ residual)
# channels on sublanes, flattened spatial on lanes.
# ----------------------------------------------------------------------------
def _fused_irb_kernel(x_ref, w_exp_ref, s1_ref, w_dw_ref, s2_ref, *rest,
                      H, W, k, s, act, use_se, shortcut, base, L):
    # ---- unpack trailing refs (SE refs only exist when use_se) --------------
    pos = 0
    if use_se:
        w_se1_ref, b_se1_ref, w_se2_ref, b_se2_ref = rest[pos:pos + 4]
        pos += 4
    w_lin_ref, s3_ref, o_ref = rest[pos:pos + 3]
    pos += 3
    f_ref = rest[pos]
    pos += 1
    if s > 1:
        zf_ref, zc_ref = rest[pos], rest[pos + 1]

    p = k // 2
    HW = H * W
    Hout = (H + 2 * p - k) // s + 1
    Wout = (W + 2 * p - k) // s + 1
    Ms = Hout * Wout
    E = w_exp_ref.shape[0]
    interior = base + p * W          # lane offset of the y interior inside f_ref

    # ---- 1x1 expand (MXU) + folded bias/BN + nonlinearity --------------------
    x = x_ref[0]                                                  # (Ci, HW)
    y = jnp.dot(w_exp_ref[...], x, preferred_element_type=jnp.float32)
    y = _act(y + s1_ref[...], act)                                # (E, HW) f32

    # ---- depthwise kxk at full resolution ------------------------------------
    # Flat, row-padded scratch: f_ref[:, interior:interior+HW] holds y
    # (row-major, row width W); the p rows above/below (plus small guards)
    # are kept at zero.  Only the thin halo strips are re-zeroed, never the
    # interior (it is fully overwritten each grid step).
    if interior > 0:
        f_ref[:, 0:interior] = jnp.zeros((E, interior), jnp.float32)
    if L - interior - HW > 0:
        f_ref[:, interior + HW:L] = jnp.zeros((E, L - interior - HW),
                                              jnp.float32)
    f_ref[:, interior:interior + HW] = y                          # aligned store

    lane = jax.lax.broadcasted_iota(jnp.int32, (1, HW), 1)
    col = lane % W
    w_dw = w_dw_ref[...].astype(jnp.float32)                      # (E, k*k)

    acc = None
    for ky in range(k):
        for kx in range(k):
            start = base + ky * W + (kx - p)                      # static offset
            tap = f_ref[:, start:start + HW]                      # shifted load
            if kx != p:                                           # column mask
                dx = kx - p
                valid = (col + dx >= 0) & (col + dx < W)
                tap = jnp.where(valid, tap, 0.0)
            t = ky * k + kx
            term = tap * w_dw[:, t:t + 1]
            acc = term if acc is None else acc + term
    z = _act(acc + s2_ref[...], act)                              # (E, HW)

    # ---- stride > 1: subsample rows/cols once (not per tap) ------------------
    if s > 1:
        zf_ref[...] = z
        for r in range(Hout):
            zc_ref[:, r * Wout:(r + 1) * Wout] = (
                zf_ref[:, pl.ds(r * s * W, Wout, stride=s)])
        z = zc_ref[...]                                           # (E, Ms)

    # ---- squeeze-excite: mean pool -> fc -> relu -> fc -> h_swish ------------
    if use_se:
        pooled = jnp.sum(z, axis=1, keepdims=True) * (1.0 / Ms)   # (E, 1)
        h = jnp.dot(w_se1_ref[...].astype(jnp.float32), pooled,
                    preferred_element_type=jnp.float32) + b_se1_ref[...]
        h = jnp.maximum(h, 0.0)
        g = jnp.dot(w_se2_ref[...].astype(jnp.float32), h,
                    preferred_element_type=jnp.float32) + b_se2_ref[...]
        z = z * _hswish(g)                                        # (E, Ms)

    # ---- 1x1 projection (MXU) + folded bias/BN + residual --------------------
    out = jnp.dot(w_lin_ref[...], z.astype(w_lin_ref.dtype),
                  preferred_element_type=jnp.float32) + s3_ref[...]   # (o, Ms)
    if shortcut:
        out = out + x.astype(jnp.float32)                         # residual
    o_ref[0] = out.astype(o_ref.dtype)


# ----------------------------------------------------------------------------
# wrapper: host-side BN folding + single pallas_call gridded over the batch
# ----------------------------------------------------------------------------
def inverted_residual_block_forward(x_nchw, params, *, i, t, o, k, s,
                                    re=False, se=False,
                                    io_dtype=jnp.float32):
    expansion = int(i * t)
    act = "relu6" if re else "hswish"
    shortcut = (i == o) and (s == 1)

    N, Ci, H, W = x_nchw.shape
    assert Ci == i
    p = k // 2
    Hout = (H + 2 * p - k) // s + 1
    Wout = (W + 2 * p - k) // s + 1
    HW, Ms = H * W, Hout * Wout
    f32 = jnp.float32

    # channels-first flattening is a free reshape (no transpose, single copy).
    x_cf = x_nchw.reshape(N, Ci, HW).astype(io_dtype)

    # Fold conv bias + BatchNorm (inference form) into weights / shifts.
    w_exp_t = (params["w_exp"] * params["bn1_scale"][None, :]).T.astype(io_dtype)   # (E, Ci)
    shift1 = (params["b_exp"] * params["bn1_scale"]
              + params["bn1_shift"]).reshape(expansion, 1).astype(f32)
    w_dw_t = (params["w_dw"].reshape(k * k, expansion)
              * params["bn2_scale"][None, :]).T.astype(io_dtype)                     # (E, k*k)
    shift2 = (params["b_dw"] * params["bn2_scale"]
              + params["bn2_shift"]).reshape(expansion, 1).astype(f32)
    w_lin_t = (params["w_lin"] * params["bn3_scale"][None, :]).T.astype(io_dtype)    # (o, E)
    shift3 = (params["b_lin"] * params["bn3_scale"]
              + params["bn3_shift"]).reshape(o, 1).astype(f32)

    mid = params["w_se1"].shape[1]
    w_se1_t = params["w_se1"].T.astype(io_dtype)                  # (mid, E)
    b_se1 = params["b_se1"].reshape(mid, 1).astype(f32)
    w_se2_t = params["w_se2"].T.astype(io_dtype)                  # (E, mid)
    b_se2 = params["b_se2"].reshape(expansion, 1).astype(f32)

    # flat depthwise scratch geometry: interior starts at a lane-aligned offset
    interior = _round_up(p + p * W, 128)
    base = interior - p * W
    L = _round_up(interior + HW + p * W + p, 128)

    kernel = functools.partial(
        _fused_irb_kernel, H=H, W=W, k=k, s=s, act=act, use_se=se,
        shortcut=shortcut, base=base, L=L)

    in_specs = [
        pl.BlockSpec((1, Ci, HW), lambda n: (n, 0, 0)),           # x (Ci, HW)
        pl.BlockSpec((expansion, Ci), lambda n: (0, 0)),          # w_exp'
        pl.BlockSpec((expansion, 1), lambda n: (0, 0)),           # shift1
        pl.BlockSpec((expansion, k * k), lambda n: (0, 0)),       # w_dw'
        pl.BlockSpec((expansion, 1), lambda n: (0, 0)),           # shift2
    ]
    args = [x_cf, w_exp_t, shift1, w_dw_t, shift2]
    if se:
        in_specs += [
            pl.BlockSpec((mid, expansion), lambda n: (0, 0)),     # w_se1'
            pl.BlockSpec((mid, 1), lambda n: (0, 0)),             # b_se1
            pl.BlockSpec((expansion, mid), lambda n: (0, 0)),     # w_se2'
            pl.BlockSpec((expansion, 1), lambda n: (0, 0)),       # b_se2
        ]
        args += [w_se1_t, b_se1, w_se2_t, b_se2]
    in_specs += [
        pl.BlockSpec((o, expansion), lambda n: (0, 0)),           # w_lin'
        pl.BlockSpec((o, 1), lambda n: (0, 0)),                   # shift3
    ]
    args += [w_lin_t, shift3]

    scratch_shapes = [pltpu.VMEM((expansion, L), jnp.float32)]
    if s > 1:
        scratch_shapes += [pltpu.VMEM((expansion, HW), jnp.float32),
                           pltpu.VMEM((expansion, Ms), jnp.float32)]

    out3 = pl.pallas_call(
        kernel,
        out_shape=jax.ShapeDtypeStruct((N, o, Ms), jnp.float32),
        grid_spec=pltpu.PrefetchScalarGridSpec(
            num_scalar_prefetch=0,
            grid=(N,),
            in_specs=in_specs,
            out_specs=pl.BlockSpec((1, o, Ms), lambda n: (n, 0, 0)),
            scratch_shapes=scratch_shapes,
        ),
        compiler_params=pltpu.CompilerParams(
            dimension_semantics=("parallel",),
            vmem_limit_bytes=32 * 1024 * 1024,
        ),
    )(*args)

    # (N, o, Hout*Wout) -> NCHW is a free reshape (no transpose).
    return out3.reshape(N, o, Hout, Wout)


# ----------------------------------------------------------------------------
# deterministic parameter init (shapes follow the module's __init__)
# ----------------------------------------------------------------------------
def init_params(key, i, t, o, k):
    expansion = int(i * t)
    mid = _make_divisible(expansion // 4)
    eps = 1e-5
    ks = jax.random.split(key, 13)

    def bn_fold(kk, c):
        a, b_, cm, cv = jax.random.split(kk, 4)
        gamma = jax.random.uniform(a, (c,), jnp.float32, 0.5, 1.5)
        beta = 0.1 * jax.random.normal(b_, (c,), jnp.float32)
        mean = 0.1 * jax.random.normal(cm, (c,), jnp.float32)
        var = jax.random.uniform(cv, (c,), jnp.float32, 0.5, 1.5)
        scale = gamma / jnp.sqrt(var + eps)
        shift = beta - mean * scale
        return scale, shift

    bn1_scale, bn1_shift = bn_fold(ks[2], expansion)
    bn2_scale, bn2_shift = bn_fold(ks[5], expansion)
    bn3_scale, bn3_shift = bn_fold(ks[12], o)

    return dict(
        w_exp=0.3 * jax.random.normal(ks[0], (i, expansion), jnp.float32),
        b_exp=0.05 * jax.random.normal(ks[1], (expansion,), jnp.float32),
        bn1_scale=bn1_scale, bn1_shift=bn1_shift,
        w_dw=0.3 * jax.random.normal(ks[3], (k, k, expansion), jnp.float32),
        b_dw=0.05 * jax.random.normal(ks[4], (expansion,), jnp.float32),
        bn2_scale=bn2_scale, bn2_shift=bn2_shift,
        w_se1=0.3 * jax.random.normal(ks[6], (expansion, mid), jnp.float32),
        b_se1=0.05 * jax.random.normal(ks[7], (mid,), jnp.float32),
        w_se2=0.3 * jax.random.normal(ks[8], (mid, expansion), jnp.float32),
        b_se2=0.05 * jax.random.normal(ks[9], (expansion,), jnp.float32),
        w_lin=0.3 * jax.random.normal(ks[10], (expansion, o), jnp.float32),
        b_lin=0.05 * jax.random.normal(ks[11], (o,), jnp.float32),
        bn3_scale=bn3_scale, bn3_shift=bn3_shift,
    )


# ----------------------------------------------------------------------------
# pure-JAX reference (same folded-BN semantics) for a correctness cross-check
# ----------------------------------------------------------------------------
def reference_forward(x_nchw, params, *, i, t, o, k, s, re=False, se=False):
    expansion = int(i * t)
    actf = _relu6 if re else _hswish
    shortcut = (i == o) and (s == 1)
    x = jnp.transpose(x_nchw, (0, 2, 3, 1)).astype(jnp.float32)

    y = jnp.einsum("nhwc,ce->nhwe", x, params["w_exp"]) + params["b_exp"]
    y = actf(y * params["bn1_scale"] + params["bn1_shift"])

    wdw = params["w_dw"].reshape(k, k, 1, expansion)
    y = jax.lax.conv_general_dilated(
        y, wdw, (s, s), [(k // 2, k // 2)] * 2,
        dimension_numbers=("NHWC", "HWIO", "NHWC"),
        feature_group_count=expansion)
    y = actf((y + params["b_dw"]) * params["bn2_scale"] + params["bn2_shift"])

    if se:
        pme = jnp.mean(y, axis=(1, 2))
        h = jnp.maximum(pme @ params["w_se1"] + params["b_se1"], 0.0)
        g = _hswish(h @ params["w_se2"] + params["b_se2"])
        y = y * g[:, None, None, :]

    out = jnp.einsum("nhwe,eo->nhwo", y, params["w_lin"]) + params["b_lin"]
    out = out * params["bn3_scale"] + params["bn3_shift"]
    if shortcut:
        out = out + x
    return jnp.transpose(out, (0, 3, 1, 2))


# ----------------------------------------------------------------------------
if __name__ == "__main__":
    # inverted_residual_block(i=8, t=2, o=8, k=3, s=1, re=False, se=True)
    i, t, o, k, s = 8, 2.0, 8, 3, 1
    re, se = False, True
    N, H, W = 2, 16, 16

    key = jax.random.PRNGKey(0)
    kx_, kp_ = jax.random.split(key)
    x = jax.random.normal(kx_, (N, i, H, W), jnp.float32)   # NCHW, as in PyTorch
    params = init_params(kp_, i, t, o, k)

    ref = reference_forward(x, params, i=i, t=t, o=o, k=k, s=s, re=re, se=se)

    # full-f32 path: strict correctness check.
    out = inverted_residual_block_forward(x, params, i=i, t=t, o=o, k=k, s=s,
                                          re=re, se=se, io_dtype=jnp.float32)
    out = jax.block_until_ready(out)
    assert out.shape == (N, o, H, W), out.shape
    if not jnp.allclose(out, ref, rtol=2e-3, atol=2e-3):
        raise AssertionError("Pallas (f32) output does not match JAX reference")

    # bf16 DMA + bf16 MXU path (f32 accumulation / f32 elementwise): loose
    # sanity bound against the f32 reference.
    out_bf16 = inverted_residual_block_forward(x, params, i=i, t=t, o=o, k=k,
                                               s=s, re=re, se=se,
                                               io_dtype=jnp.bfloat16)
    out_bf16 = jax.block_until_ready(out_bf16)
    if not jnp.allclose(out_bf16, ref, rtol=1e-1, atol=1e-1):
        raise AssertionError("Pallas (bf16) output does not match JAX reference")

    print("KERNEL_OK")
</pallas_src>

<mosaic_0001>
module attributes {stable_mosaic.version = 11 : i64} {
  func.func @_fused_irb_kernel(%arg0: i32, %arg1: memref<1x8x256xf32, #tpu.memory_space<vmem>>, %arg2: memref<16x8xf32, #tpu.memory_space<vmem>>, %arg3: memref<16x1xf32, #tpu.memory_space<vmem>>, %arg4: memref<16x9xf32, #tpu.memory_space<vmem>>, %arg5: memref<16x1xf32, #tpu.memory_space<vmem>>, %arg6: memref<8x16xf32, #tpu.memory_space<vmem>>, %arg7: memref<8x1xf32, #tpu.memory_space<vmem>>, %arg8: memref<16x8xf32, #tpu.memory_space<vmem>>, %arg9: memref<16x1xf32, #tpu.memory_space<vmem>>, %arg10: memref<8x16xf32, #tpu.memory_space<vmem>>, %arg11: memref<8x1xf32, #tpu.memory_space<vmem>>, %arg12: memref<1x8x256xf32, #tpu.memory_space<vmem>>, %arg13: memref<16x512xf32, #tpu.memory_space<vmem>>) attributes {dimension_semantics = [#tpu.dimension_semantics<parallel>], iteration_bounds = array<i64: 2>, scalar_prefetch = 0 : i64, scratch_operands = 1 : i64, tpu.core_type = #tpu.core_type<tc>, window_params = [{transform_indices = @transform_0, window_bounds = array<i64: 1, 8, 256>}, {pipeline_mode = #tpu.pipeline_mode<synchronous>, transform_indices = @transform_1, window_bounds = array<i64: 16, 8>}, {pipeline_mode = #tpu.pipeline_mode<synchronous>, transform_indices = @transform_2, window_bounds = array<i64: 16, 1>}, {pipeline_mode = #tpu.pipeline_mode<synchronous>, transform_indices = @transform_3, window_bounds = array<i64: 16, 9>}, {pipeline_mode = #tpu.pipeline_mode<synchronous>, transform_indices = @transform_4, window_bounds = array<i64: 16, 1>}, {pipeline_mode = #tpu.pipeline_mode<synchronous>, transform_indices = @transform_5, window_bounds = array<i64: 8, 16>}, {pipeline_mode = #tpu.pipeline_mode<synchronous>, transform_indices = @transform_6, window_bounds = array<i64: 8, 1>}, {pipeline_mode = #tpu.pipeline_mode<synchronous>, transform_indices = @transform_7, window_bounds = array<i64: 16, 8>}, {pipeline_mode = #tpu.pipeline_mode<synchronous>, transform_indices = @transform_8, window_bounds = array<i64: 16, 1>}, {pipeline_mode = #tpu.pipeline_mode<synchronous>, transform_indices = @transform_9, window_bounds = array<i64: 8, 16>}, {pipeline_mode = #tpu.pipeline_mode<synchronous>, transform_indices = @transform_10, window_bounds = array<i64: 8, 1>}, {transform_indices = @transform_11, window_bounds = array<i64: 1, 8, 256>}]} {
    %c0 = arith.constant 0 : index
    %c0_0 = arith.constant 0 : index
    %c0_1 = arith.constant 0 : index
    %0 = vector.load %arg1[%c0, %c0_0, %c0_1] : memref<1x8x256xf32, #tpu.memory_space<vmem>>, vector<1x8x256xf32>
    %1 = vector.shape_cast %0 : vector<1x8x256xf32> to vector<8x256xf32>
    %c0_2 = arith.constant 0 : index
    %c0_3 = arith.constant 0 : index
    %2 = vector.load %arg2[%c0_2, %c0_3] : memref<16x8xf32, #tpu.memory_space<vmem>>, vector<16x8xf32>
    %cst = arith.constant dense<0.000000e+00> : vector<16x256xf32>
    %3 = tpu.matmul %2, %1, %cst {dimension_numbers = #tpu.dot_dimension_numbers<[1], [0], [0], [1], [0, 0, 1, 1], [], []>} : vector<16x8xf32>, vector<8x256xf32>, vector<16x256xf32> -> vector<16x256xf32>
    %c0_4 = arith.constant 0 : index
    %c0_5 = arith.constant 0 : index
    %4 = vector.load %arg3[%c0_4, %c0_5] : memref<16x1xf32, #tpu.memory_space<vmem>>, vector<16x1xf32>
    %5 = vector.broadcast %4 : vector<16x1xf32> to vector<16x256xf32>
    %6 = arith.addf %3, %5 : vector<16x256xf32>
    %cst_6 = arith.constant 3.000000e+00 : f32
    %7 = vector.broadcast %cst_6 : f32 to vector<16x256xf32>
    %8 = arith.addf %6, %7 : vector<16x256xf32>
    %cst_7 = arith.constant 0.000000e+00 : f32
    %cst_8 = arith.constant 6.000000e+00 : f32
    %9 = vector.broadcast %cst_7 : f32 to vector<16x256xf32>
    %10 = arith.maximumf %9, %8 : vector<16x256xf32>
    %11 = vector.broadcast %cst_8 : f32 to vector<16x256xf32>
    %12 = arith.minimumf %11, %10 : vector<16x256xf32>
    %cst_9 = arith.constant 0.166666672 : f32
    %13 = vector.broadcast %cst_9 : f32 to vector<16x256xf32>
    %14 = arith.mulf %12, %13 : vector<16x256xf32>
    %15 = arith.mulf %6, %14 : vector<16x256xf32>
    %cst_10 = arith.constant 0.000000e+00 : f32
    %16 = vector.broadcast %cst_10 : f32 to vector<16x128xf32>
    %c0_11 = arith.constant 0 : index
    %c0_12 = arith.constant 0 : index
    %17 = vector.load %arg13[%c0_11, %c0_12] : memref<16x512xf32, #tpu.memory_space<vmem>>, vector<16x128xf32>
    tpu.vector_store %arg13[%c0_11, %c0_12], %16 {strides = array<i32>} : memref<16x512xf32, #tpu.memory_space<vmem>>, vector<16x128xf32>,
    %cst_13 = arith.constant 0.000000e+00 : f32
    %18 = vector.broadcast %cst_13 : f32 to vector<16x128xf32>
    %c0_14 = arith.constant 0 : index
    %c384 = arith.constant 384 : index
    %19 = vector.load %arg13[%c0_14, %c384] : memref<16x512xf32, #tpu.memory_space<vmem>>, vector<16x128xf32>
    tpu.vector_store %arg13[%c0_14, %c384], %18 {strides = array<i32>} : memref<16x512xf32, #tpu.memory_space<vmem>>, vector<16x128xf32>,
    %c0_15 = arith.constant 0 : index
    %c128 = arith.constant 128 : index
    %20 = vector.load %arg13[%c0_15, %c128] : memref<16x512xf32, #tpu.memory_space<vmem>>, vector<16x256xf32>
    tpu.vector_store %arg13[%c0_15, %c128], %15 {strides = array<i32>} : memref<16x512xf32, #tpu.memory_space<vmem>>, vector<16x256xf32>,
    %21 = tpu.iota {dimensions = array<i32: 1>} : vector<1x256xi32>
    %c16_i32 = arith.constant 16 : i32
    %c0_i32 = arith.constant 0 : i32
    %22 = arith.cmpi eq, %c16_i32, %c0_i32 : i32
    %c1_i32 = arith.constant 1 : i32
    %23 = arith.select %22, %c1_i32, %c16_i32 : i32
    %24 = vector.broadcast %23 : i32 to vector<1x256xi32>
    %25 = arith.remsi %21, %24 : vector<1x256xi32>
    %c0_i32_16 = arith.constant 0 : i32
    %26 = vector.broadcast %c0_i32_16 : i32 to vector<1x256xi32>
    %27 = arith.cmpi ne, %25, %26 : vector<1x256xi32>
    %c0_i32_17 = arith.constant 0 : i32
    %28 = vector.broadcast %c0_i32_17 : i32 to vector<1x256xi32>
    %29 = arith.cmpi slt, %25, %28 : vector<1x256xi32>
    %c0_i32_18 = arith.constant 0 : i32
    %30 = arith.cmpi slt, %23, %c0_i32_18 : i32
    %31 = vector.broadcast %30 : i1 to vector<1x256xi1>
    %32 = vector.broadcast %31 : vector<1x256xi1> to vector<1x256xi1>
    %33 = arith.xori %29, %32 : vector<1x256xi1>
    %34 = arith.andi %33, %27 : vector<1x256xi1>
    %35 = vector.broadcast %23 : i32 to vector<1x256xi32>
    %36 = arith.addi %25, %35 : vector<1x256xi32>
    %37 = arith.select %34, %36, %25 : vector<1x256xi1>, vector<1x256xi32>
    %c0_19 = arith.constant 0 : index
    %c0_20 = arith.constant 0 : index
    %38 = vector.load %arg4[%c0_19, %c0_20] : memref<16x9xf32, #tpu.memory_space<vmem>>, vector<16x9xf32>
    %c0_21 = arith.constant 0 : index
    %c111 = arith.constant 111 : index
    %39 = vector.load %arg13[%c0_21, %c111] : memref<16x512xf32, #tpu.memory_space<vmem>>, vector<16x256xf32>
    %c-1_i32 = arith.constant -1 : i32
    %40 = vector.broadcast %c-1_i32 : i32 to vector<1x256xi32>
    %41 = arith.addi %37, %40 : vector<1x256xi32>
    %c0_i32_22 = arith.constant 0 : i32
    %42 = vector.broadcast %c0_i32_22 : i32 to vector<1x256xi32>
    %43 = arith.cmpi sge, %41, %42 : vector<1x256xi32>
    %c-1_i32_23 = arith.constant -1 : i32
    %44 = vector.broadcast %c-1_i32_23 : i32 to vector<1x256xi32>
    %45 = arith.addi %37, %44 : vector<1x256xi32>
    %c16_i32_24 = arith.constant 16 : i32
    %46 = vector.broadcast %c16_i32_24 : i32 to vector<1x256xi32>
    %47 = arith.cmpi slt, %45, %46 : vector<1x256xi32>
    %48 = arith.andi %43, %47 : vector<1x256xi1>
    %cst_25 = arith.constant 0.000000e+00 : f32
    %49 = vector.shape_cast %48 : vector<1x256xi1> to vector<1x256xi1>
    %50 = vector.broadcast %49 : vector<1x256xi1> to vector<16x256xi1>
    %51 = vector.broadcast %cst_25 : f32 to vector<16x256xf32>
    %52 = arith.select %50, %39, %51 : vector<16x256xi1>, vector<16x256xf32>
    %53 = vector.extract_strided_slice %38 {offsets = [0, 0], sizes = [16, 1], strides = [1, 1]} : vector<16x9xf32> to vector<16x1xf32>
    %54 = vector.broadcast %53 : vector<16x1xf32> to vector<16x256xf32>
    %55 = arith.mulf %52, %54 : vector<16x256xf32>
    %c0_26 = arith.constant 0 : index
    %c112 = arith.constant 112 : index
    %56 = vector.load %arg13[%c0_26, %c112] : memref<16x512xf32, #tpu.memory_space<vmem>>, vector<16x256xf32>
    %57 = vector.extract_strided_slice %38 {offsets = [0, 1], sizes = [16, 1], strides = [1, 1]} : vector<16x9xf32> to vector<16x1xf32>
    %58 = vector.broadcast %57 : vector<16x1xf32> to vector<16x256xf32>
    %59 = arith.mulf %56, %58 : vector<16x256xf32>
    %60 = arith.addf %55, %59 : vector<16x256xf32>
    %c0_27 = arith.constant 0 : index
    %c113 = arith.constant 113 : index
    %61 = vector.load %arg13[%c0_27, %c113] : memref<16x512xf32, #tpu.memory_space<vmem>>, vector<16x256xf32>
    %c1_i32_28 = arith.constant 1 : i32
    %62 = vector.broadcast %c1_i32_28 : i32 to vector<1x256xi32>
    %63 = arith.addi %37, %62 : vector<1x256xi32>
    %c0_i32_29 = arith.constant 0 : i32
    %64 = vector.broadcast %c0_i32_29 : i32 to vector<1x256xi32>
    %65 = arith.cmpi sge, %63, %64 : vector<1x256xi32>
    %c1_i32_30 = arith.constant 1 : i32
    %66 = vector.broadcast %c1_i32_30 : i32 to vector<1x256xi32>
    %67 = arith.addi %37, %66 : vector<1x256xi32>
    %c16_i32_31 = arith.constant 16 : i32
    %68 = vector.broadcast %c16_i32_31 : i32 to vector<1x256xi32>
    %69 = arith.cmpi slt, %67, %68 : vector<1x256xi32>
    %70 = arith.andi %65, %69 : vector<1x256xi1>
    %cst_32 = arith.constant 0.000000e+00 : f32
    %71 = vector.shape_cast %70 : vector<1x256xi1> to vector<1x256xi1>
    %72 = vector.broadcast %71 : vector<1x256xi1> to vector<16x256xi1>
    %73 = vector.broadcast %cst_32 : f32 to vector<16x256xf32>
    %74 = arith.select %72, %61, %73 : vector<16x256xi1>, vector<16x256xf32>
    %75 = vector.extract_strided_slice %38 {offsets = [0, 2], sizes = [16, 1], strides = [1, 1]} : vector<16x9xf32> to vector<16x1xf32>
    %76 = vector.broadcast %75 : vector<16x1xf32> to vector<16x256xf32>
    %77 = arith.mulf %74, %76 : vector<16x256xf32>
    %78 = arith.addf %60, %77 : vector<16x256xf32>
    %c0_33 = arith.constant 0 : index
    %c127 = arith.constant 127 : index
    %79 = vector.load %arg13[%c0_33, %c127] : memref<16x512xf32, #tpu.memory_space<vmem>>, vector<16x256xf32>
    %c-1_i32_34 = arith.constant -1 : i32
    %80 = vector.broadcast %c-1_i32_34 : i32 to vector<1x256xi32>
    %81 = arith.addi %37, %80 : vector<1x256xi32>
    %c0_i32_35 = arith.constant 0 : i32
    %82 = vector.broadcast %c0_i32_35 : i32 to vector<1x256xi32>
    %83 = arith.cmpi sge, %81, %82 : vector<1x256xi32>
    %c-1_i32_36 = arith.constant -1 : i32
    %84 = vector.broadcast %c-1_i32_36 : i32 to vector<1x256xi32>
    %85 = arith.addi %37, %84 : vector<1x256xi32>
    %c16_i32_37 = arith.constant 16 : i32
    %86 = vector.broadcast %c16_i32_37 : i32 to vector<1x256xi32>
    %87 = arith.cmpi slt, %85, %86 : vector<1x256xi32>
    %88 = arith.andi %83, %87 : vector<1x256xi1>
    %cst_38 = arith.constant 0.000000e+00 : f32
    %89 = vector.shape_cast %88 : vector<1x256xi1> to vector<1x256xi1>
    %90 = vector.broadcast %89 : vector<1x256xi1> to vector<16x256xi1>
    %91 = vector.broadcast %cst_38 : f32 to vector<16x256xf32>
    %92 = arith.select %90, %79, %91 : vector<16x256xi1>, vector<16x256xf32>
    %93 = vector.extract_strided_slice %38 {offsets = [0, 3], sizes = [16, 1], strides = [1, 1]} : vector<16x9xf32> to vector<16x1xf32>
    %94 = vector.broadcast %93 : vector<16x1xf32> to vector<16x256xf32>
    %95 = arith.mulf %92, %94 : vector<16x256xf32>
    %96 = arith.addf %78, %95 : vector<16x256xf32>
    %c0_39 = arith.constant 0 : index
    %c128_40 = arith.constant 128 : index
    %97 = vector.load %arg13[%c0_39, %c128_40] : memref<16x512xf32, #tpu.memory_space<vmem>>, vector<16x256xf32>
    %98 = vector.extract_strided_slice %38 {offsets = [0, 4], sizes = [16, 1], strides = [1, 1]} : vector<16x9xf32> to vector<16x1xf32>
    %99 = vector.broadcast %98 : vector<16x1xf32> to vector<16x256xf32>
    %100 = arith.mulf %97, %99 : vector<16x256xf32>
    %101 = arith.addf %96, %100 : vector<16x256xf32>
    %c0_41 = arith.constant 0 : index
    %c129 = arith.constant 129 : index
    %102 = vector.load %arg13[%c0_41, %c129] : memref<16x512xf32, #tpu.memory_space<vmem>>, vector<16x256xf32>
    %c1_i32_42 = arith.constant 1 : i32
    %103 = vector.broadcast %c1_i32_42 : i32 to vector<1x256xi32>
    %104 = arith.addi %37, %103 : vector<1x256xi32>
    %c0_i32_43 = arith.constant 0 : i32
    %105 = vector.broadcast %c0_i32_43 : i32 to vector<1x256xi32>
    %106 = arith.cmpi sge, %104, %105 : vector<1x256xi32>
    %c1_i32_44 = arith.constant 1 : i32
    %107 = vector.broadcast %c1_i32_44 : i32 to vector<1x256xi32>
    %108 = arith.addi %37, %107 : vector<1x256xi32>
    %c16_i32_45 = arith.constant 16 : i32
    %109 = vector.broadcast %c16_i32_45 : i32 to vector<1x256xi32>
    %110 = arith.cmpi slt, %108, %109 : vector<1x256xi32>
    %111 = arith.andi %106, %110 : vector<1x256xi1>
    %cst_46 = arith.constant 0.000000e+00 : f32
    %112 = vector.shape_cast %111 : vector<1x256xi1> to vector<1x256xi1>
    %113 = vector.broadcast %112 : vector<1x256xi1> to vector<16x256xi1>
    %114 = vector.broadcast %cst_46 : f32 to vector<16x256xf32>
    %115 = arith.select %113, %102, %114 : vector<16x256xi1>, vector<16x256xf32>
    %116 = vector.extract_strided_slice %38 {offsets = [0, 5], sizes = [16, 1], strides = [1, 1]} : vector<16x9xf32> to vector<16x1xf32>
    %117 = vector.broadcast %116 : vector<16x1xf32> to vector<16x256xf32>
    %118 = arith.mulf %115, %117 : vector<16x256xf32>
    %119 = arith.addf %101, %118 : vector<16x256xf32>
    %c0_47 = arith.constant 0 : index
    %c143 = arith.constant 143 : index
    %120 = vector.load %arg13[%c0_47, %c143] : memref<16x512xf32, #tpu.memory_space<vmem>>, vector<16x256xf32>
    %c-1_i32_48 = arith.constant -1 : i32
    %121 = vector.broadcast %c-1_i32_48 : i32 to vector<1x256xi32>
    %122 = arith.addi %37, %121 : vector<1x256xi32>
    %c0_i32_49 = arith.constant 0 : i32
    %123 = vector.broadcast %c0_i32_49 : i32 to vector<1x256xi32>
    %124 = arith.cmpi sge, %122, %123 : vector<1x256xi32>
    %c-1_i32_50 = arith.constant -1 : i32
    %125 = vector.broadcast %c-1_i32_50 : i32 to vector<1x256xi32>
    %126 = arith.addi %37, %125 : vector<1x256xi32>
    %c16_i32_51 = arith.constant 16 : i32
    %127 = vector.broadcast %c16_i32_51 : i32 to vector<1x256xi32>
    %128 = arith.cmpi slt, %126, %127 : vector<1x256xi32>
    %129 = arith.andi %124, %128 : vector<1x256xi1>
    %cst_52 = arith.constant 0.000000e+00 : f32
    %130 = vector.shape_cast %129 : vector<1x256xi1> to vector<1x256xi1>
    %131 = vector.broadcast %130 : vector<1x256xi1> to vector<16x256xi1>
    %132 = vector.broadcast %cst_52 : f32 to vector<16x256xf32>
    %133 = arith.select %131, %120, %132 : vector<16x256xi1>, vector<16x256xf32>
    %134 = vector.extract_strided_slice %38 {offsets = [0, 6], sizes = [16, 1], strides = [1, 1]} : vector<16x9xf32> to vector<16x1xf32>
    %135 = vector.broadcast %134 : vector<16x1xf32> to vector<16x256xf32>
    %136 = arith.mulf %133, %135 : vector<16x256xf32>
    %137 = arith.addf %119, %136 : vector<16x256xf32>
    %c0_53 = arith.constant 0 : index
    %c144 = arith.constant 144 : index
    %138 = vector.load %arg13[%c0_53, %c144] : memref<16x512xf32, #tpu.memory_space<vmem>>, vector<16x256xf32>
    %139 = vector.extract_strided_slice %38 {offsets = [0, 7], sizes = [16, 1], strides = [1, 1]} : vector<16x9xf32> to vector<16x1xf32>
    %140 = vector.broadcast %139 : vector<16x1xf32> to vector<16x256xf32>
    %141 = arith.mulf %138, %140 : vector<16x256xf32>
    %142 = arith.addf %137, %141 : vector<16x256xf32>
    %c0_54 = arith.constant 0 : index
    %c145 = arith.constant 145 : index
    %143 = vector.load %arg13[%c0_54, %c145] : memref<16x512xf32, #tpu.memory_space<vmem>>, vector<16x256xf32>
    %c1_i32_55 = arith.constant 1 : i32
    %144 = vector.broadcast %c1_i32_55 : i32 to vector<1x256xi32>
    %145 = arith.addi %37, %144 : vector<1x256xi32>
    %c0_i32_56 = arith.constant 0 : i32
    %146 = vector.broadcast %c0_i32_56 : i32 to vector<1x256xi32>
    %147 = arith.cmpi sge, %145, %146 : vector<1x256xi32>
    %c1_i32_57 = arith.constant 1 : i32
    %148 = vector.broadcast %c1_i32_57 : i32 to vector<1x256xi32>
    %149 = arith.addi %37, %148 : vector<1x256xi32>
    %c16_i32_58 = arith.constant 16 : i32
    %150 = vector.broadcast %c16_i32_58 : i32 to vector<1x256xi32>
    %151 = arith.cmpi slt, %149, %150 : vector<1x256xi32>
    %152 = arith.andi %147, %151 : vector<1x256xi1>
    %cst_59 = arith.constant 0.000000e+00 : f32
    %153 = vector.shape_cast %152 : vector<1x256xi1> to vector<1x256xi1>
    %154 = vector.broadcast %153 : vector<1x256xi1> to vector<16x256xi1>
    %155 = vector.broadcast %cst_59 : f32 to vector<16x256xf32>
    %156 = arith.select %154, %143, %155 : vector<16x256xi1>, vector<16x256xf32>
    %157 = vector.extract_strided_slice %38 {offsets = [0, 8], sizes = [16, 1], strides = [1, 1]} : vector<16x9xf32> to vector<16x1xf32>
    %158 = vector.broadcast %157 : vector<16x1xf32> to vector<16x256xf32>
    %159 = arith.mulf %156, %158 : vector<16x256xf32>
    %160 = arith.addf %142, %159 : vector<16x256xf32>
    %c0_60 = arith.constant 0 : index
    %c0_61 = arith.constant 0 : index
    %161 = vector.load %arg5[%c0_60, %c0_61] : memref<16x1xf32, #tpu.memory_space<vmem>>, vector<16x1xf32>
    %162 = vector.broadcast %161 : vector<16x1xf32> to vector<16x256xf32>
    %163 = arith.addf %160, %162 : vector<16x256xf32>
    %cst_62 = arith.constant 3.000000e+00 : f32
    %164 = vector.broadcast %cst_62 : f32 to vector<16x256xf32>
    %165 = arith.addf %163, %164 : vector<16x256xf32>
    %cst_63 = arith.constant 0.000000e+00 : f32
    %cst_64 = arith.constant 6.000000e+00 : f32
    %166 = vector.broadcast %cst_63 : f32 to vector<16x256xf32>
    %167 = arith.maximumf %166, %165 : vector<16x256xf32>
    %168 = vector.broadcast %cst_64 : f32 to vector<16x256xf32>
    %169 = arith.minimumf %168, %167 : vector<16x256xf32>
    %cst_65 = arith.constant 0.166666672 : f32
    %170 = vector.broadcast %cst_65 : f32 to vector<16x256xf32>
    %171 = arith.mulf %169, %170 : vector<16x256xf32>
    %172 = arith.mulf %163, %171 : vector<16x256xf32>
    %cst_66 = arith.constant dense<0.000000e+00> : vector<16xf32>
    %173 = vector.multi_reduction <add>, %172, %cst_66 [1] : vector<16x256xf32> to vector<16xf32>
    %174 = vector.shape_cast %173 : vector<16xf32> to vector<16x1xf32>
    %cst_67 = arith.constant 3.906250e-03 : f32
    %175 = vector.broadcast %cst_67 : f32 to vector<16x1xf32>
    %176 = arith.mulf %174, %175 : vector<16x1xf32>
    %c0_68 = arith.constant 0 : index
    %c0_69 = arith.constant 0 : index
    %177 = vector.load %arg6[%c0_68, %c0_69] : memref<8x16xf32, #tpu.memory_space<vmem>>, vector<8x16xf32>
    %cst_70 = arith.constant dense<0.000000e+00> : vector<8x1xf32>
    %178 = tpu.matmul %177, %176, %cst_70 {dimension_numbers = #tpu.dot_dimension_numbers<[1], [0], [0], [1], [0, 0, 1, 1], [], []>} : vector<8x16xf32>, vector<16x1xf32>, vector<8x1xf32> -> vector<8x1xf32>
    %c0_71 = arith.constant 0 : index
    %c0_72 = arith.constant 0 : index
    %179 = vector.load %arg7[%c0_71, %c0_72] : memref<8x1xf32, #tpu.memory_space<vmem>>, vector<8x1xf32>
    %180 = arith.addf %178, %179 : vector<8x1xf32>
    %cst_73 = arith.constant 0.000000e+00 : f32
    %181 = vector.broadcast %cst_73 : f32 to vector<8x1xf32>
    %182 = arith.maximumf %180, %181 : vector<8x1xf32>
    %c0_74 = arith.constant 0 : index
    %c0_75 = arith.constant 0 : index
    %183 = vector.load %arg8[%c0_74, %c0_75] : memref<16x8xf32, #tpu.memory_space<vmem>>, vector<16x8xf32>
    %cst_76 = arith.constant dense<0.000000e+00> : vector<16x1xf32>
    %184 = tpu.matmul %183, %182, %cst_76 {dimension_numbers = #tpu.dot_dimension_numbers<[1], [0], [0], [1], [0, 0, 1, 1], [], []>} : vector<16x8xf32>, vector<8x1xf32>, vector<16x1xf32> -> vector<16x1xf32>
    %c0_77 = arith.constant 0 : index
    %c0_78 = arith.constant 0 : index
    %185 = vector.load %arg9[%c0_77, %c0_78] : memref<16x1xf32, #tpu.memory_space<vmem>>, vector<16x1xf32>
    %186 = arith.addf %184, %185 : vector<16x1xf32>
    %cst_79 = arith.constant 3.000000e+00 : f32
    %187 = vector.broadcast %cst_79 : f32 to vector<16x1xf32>
    %188 = arith.addf %186, %187 : vector<16x1xf32>
    %cst_80 = arith.constant 0.000000e+00 : f32
    %cst_81 = arith.constant 6.000000e+00 : f32
    %189 = vector.broadcast %cst_80 : f32 to vector<16x1xf32>
    %190 = arith.maximumf %189, %188 : vector<16x1xf32>
    %191 = vector.broadcast %cst_81 : f32 to vector<16x1xf32>
    %192 = arith.minimumf %191, %190 : vector<16x1xf32>
    %cst_82 = arith.constant 0.166666672 : f32
    %193 = vector.broadcast %cst_82 : f32 to vector<16x1xf32>
    %194 = arith.mulf %192, %193 : vector<16x1xf32>
    %195 = arith.mulf %186, %194 : vector<16x1xf32>
    %196 = vector.broadcast %195 : vector<16x1xf32> to vector<16x256xf32>
    %197 = arith.mulf %172, %196 : vector<16x256xf32>
    %c0_83 = arith.constant 0 : index
    %c0_84 = arith.constant 0 : index
    %198 = vector.load %arg10[%c0_83, %c0_84] : memref<8x16xf32, #tpu.memory_space<vmem>>, vector<8x16xf32>
    %cst_85 = arith.constant dense<0.000000e+00> : vector<8x256xf32>
    %199 = tpu.matmul %198, %197, %cst_85 {dimension_numbers = #tpu.dot_dimension_numbers<[1], [0], [0], [1], [0, 0, 1, 1], [], []>} : vector<8x16xf32>, vector<16x256xf32>, vector<8x256xf32> -> vector<8x256xf32>
    %c0_86 = arith.constant 0 : index
    %c0_87 = arith.constant 0 : index
    %200 = vector.load %arg11[%c0_86, %c0_87] : memref<8x1xf32, #tpu.memory_space<vmem>>, vector<8x1xf32>
    %201 = vector.broadcast %200 : vector<8x1xf32> to vector<8x256xf32>
    %202 = arith.addf %199, %201 : vector<8x256xf32>
    %203 = arith.addf %202, %1 : vector<8x256xf32>
    %c0_88 = arith.constant 0 : index
    %c0_89 = arith.constant 0 : index
    %c0_90 = arith.constant 0 : index
    %204 = vector.load %arg12[%c0_88, %c0_89, %c0_90] : memref<1x8x256xf32, #tpu.memory_space<vmem>>, vector<1x8x256xf32>
    %205 = vector.shape_cast %204 : vector<1x8x256xf32> to vector<8x256xf32>
    %206 = vector.shape_cast %203 : vector<8x256xf32> to vector<1x8x256xf32>
    tpu.vector_store %arg12[%c0_88, %c0_89, %c0_90], %206 {strides = array<i32>} : memref<1x8x256xf32, #tpu.memory_space<vmem>>, vector<1x8x256xf32>,
    return
  }
  func.func @transform_0(%arg0: i32) -> (i32, i32, i32) {
    %c0_i32 = arith.constant 0 : i32
    %c0_i32_0 = arith.constant 0 : i32
    %c0_i32_1 = arith.constant 0 : i32
    return %arg0, %c0_i32, %c0_i32_0 : i32, i32, i32
  }
  func.func @transform_1(%arg0: i32) -> (i32, i32) {
    %c0_i32 = arith.constant 0 : i32
    %c0_i32_0 = arith.constant 0 : i32
    %c0_i32_1 = arith.constant 0 : i32
    return %c0_i32, %c0_i32_0 : i32, i32
  }
  func.func @transform_2(%arg0: i32) -> (i32, i32) {
    %c0_i32 = arith.constant 0 : i32
    %c0_i32_0 = arith.constant 0 : i32
    %c0_i32_1 = arith.constant 0 : i32
    return %c0_i32, %c0_i32_0 : i32, i32
  }
  func.func @transform_3(%arg0: i32) -> (i32, i32) {
    %c0_i32 = arith.constant 0 : i32
    %c0_i32_0 = arith.constant 0 : i32
    %c0_i32_1 = arith.constant 0 : i32
    return %c0_i32, %c0_i32_0 : i32, i32
  }
  func.func @transform_4(%arg0: i32) -> (i32, i32) {
    %c0_i32 = arith.constant 0 : i32
    %c0_i32_0 = arith.constant 0 : i32
    %c0_i32_1 = arith.constant 0 : i32
    return %c0_i32, %c0_i32_0 : i32, i32
  }
  func.func @transform_5(%arg0: i32) -> (i32, i32) {
    %c0_i32 = arith.constant 0 : i32
    %c0_i32_0 = arith.constant 0 : i32
    %c0_i32_1 = arith.constant 0 : i32
    return %c0_i32, %c0_i32_0 : i32, i32
  }
  func.func @transform_6(%arg0: i32) -> (i32, i32) {
    %c0_i32 = arith.constant 0 : i32
    %c0_i32_0 = arith.constant 0 : i32
    %c0_i32_1 = arith.constant 0 : i32
    return %c0_i32, %c0_i32_0 : i32, i32
  }
  func.func @transform_7(%arg0: i32) -> (i32, i32) {
    %c0_i32 = arith.constant 0 : i32
    %c0_i32_0 = arith.constant 0 : i32
    %c0_i32_1 = arith.constant 0 : i32
    return %c0_i32, %c0_i32_0 : i32, i32
  }
  func.func @transform_8(%arg0: i32) -> (i32, i32) {
    %c0_i32 = arith.constant 0 : i32
    %c0_i32_0 = arith.constant 0 : i32
    %c0_i32_1 = arith.constant 0 : i32
    return %c0_i32, %c0_i32_0 : i32, i32
  }
  func.func @transform_9(%arg0: i32) -> (i32, i32) {
    %c0_i32 = arith.constant 0 : i32
    %c0_i32_0 = arith.constant 0 : i32
    %c0_i32_1 = arith.constant 0 : i32
    return %c0_i32, %c0_i32_0 : i32, i32
  }
  func.func @transform_10(%arg0: i32) -> (i32, i32) {
    %c0_i32 = arith.constant 0 : i32
    %c0_i32_0 = arith.constant 0 : i32
    %c0_i32_1 = arith.constant 0 : i32
    return %c0_i32, %c0_i32_0 : i32, i32
  }
  func.func @transform_11(%arg0: i32) -> (i32, i32, i32) {
    %c0_i32 = arith.constant 0 : i32
    %c0_i32_0 = arith.constant 0 : i32
    %c0_i32_1 = arith.constant 0 : i32
    return %arg0, %c0_i32, %c0_i32_0 : i32, i32, i32
  }
}

</mosaic_0001>

<llo_original>
// kernel: tpu_custom_call.1
$region0: #{tpu_custom_call.1}
  #allocation0 [shape = 'u32[]', space=smem, size = 0x4, offset = 0x4, fixed_abs, tag = 'smem constant byte address 0x4 - core index']
  #allocation1 [shape = 'u32[144,128]{1,0:T(1,128)}', space=vmem, size = 0x12000, scoped, tag = 'internal scratch']
  #allocation2 [shape = 'f32[16,512]{1,0:T(8,128)}', space=vmem, size = 0x8000, scoped, tag = 'scratch operand']
  %s0 = inlined_call_operand.vmem [shape: f32[2,8,256], index: 0, kind: input, shape index: {}]
  %s1 = inlined_call_operand.vmem [shape: f32[16,8], index: 1, kind: input, shape index: {}]
  %s2 = inlined_call_operand.vmem [shape: f32[16,1], index: 2, kind: input, shape index: {}]
  %s3 = inlined_call_operand.vmem [shape: f32[16,9], index: 3, kind: input, shape index: {}]
  %s4 = inlined_call_operand.vmem [shape: f32[16,1], index: 4, kind: input, shape index: {}]
  %s5 = inlined_call_operand.vmem [shape: f32[8,16], index: 5, kind: input, shape index: {}]
  %s6 = inlined_call_operand.vmem [shape: f32[8,1], index: 6, kind: input, shape index: {}]
  %s7 = inlined_call_operand.vmem [shape: f32[16,8], index: 7, kind: input, shape index: {}]
  %s8 = inlined_call_operand.vmem [shape: f32[16,1], index: 8, kind: input, shape index: {}]
  %s9 = inlined_call_operand.vmem [shape: f32[8,16], index: 9, kind: input, shape index: {}]
  %s10 = inlined_call_operand.vmem [shape: f32[8,1], index: 10, kind: input, shape index: {}]
  %s11 = inlined_call_operand.hbm [shape: f32[2,8,256], index: 11, kind: output, shape index: {}]
  %s12 = sld [smem:[#allocation0]]
  $region77: #{tpu_custom_call.1} parent=0
    _
  %s14 = ssub.s32 1, %s12
  %s15 = scalar_select 0, %s14, %s12
  $region1: #{tpu_custom_call.1} parent=0
    #allocation3 [shape = 'u8[16384]{0}', space=vmem, size = 0x4000, scoped, tag = 'output window, operand 0']
    #allocation4 [shape = 's32[2]{0}', space=sflag, size = 0x8, scoped, tag = 'scoped memory for tpu_custom_call.1']
    %16 = vsyncpa [#allocation4], 0
    %s17 = scalar_lea.sflag [#allocation4], 1
    %18 = vsyncpa %s17, 0
    loop: start=0, step=1, limit=4
    $region2: #{tpu_custom_call.1} parent=1 // loop_pre_header
      _
    $region3: #{tpu_custom_call.1} parent=1 // loop_header
      %s20 = sphi 0, %s24
      %p21 = scmp.ge.s32.totalorder %s20, 4
      %s30 = sphi 0, %s32
      %s33 = sphi 0, %s30
      %s34 = sphi 0, %s33
      %s50 = sphi 0, %s34
      %s54 = sphi 0, %s54
      %s56 = sphi 0, %s54
      %s57 = sphi 0, %s56
      %s71 = sphi 0, %s57
      %s75 = sphi 0, %s75
      %s77 = sphi 0, %s75
      %s78 = sphi 0, %s77
      %s92 = sphi 0, %s78
      %s96 = sphi 0, %s96
      %s98 = sphi 0, %s96
      %s99 = sphi 0, %s98
      %s113 = sphi 0, %s99
      %s117 = sphi 0, %s117
      %s119 = sphi 0, %s117
      %s120 = sphi 0, %s119
      %s134 = sphi 0, %s120
      %s138 = sphi 0, %s138
      %s140 = sphi 0, %s138
      %s141 = sphi 0, %s140
      %s155 = sphi 0, %s141
      %s159 = sphi 0, %s159
      %s161 = sphi 0, %s159
      %s162 = sphi 0, %s161
      %s176 = sphi 0, %s162
      %s180 = sphi 0, %s180
      %s182 = sphi 0, %s180
      %s183 = sphi 0, %s182
      %s197 = sphi 0, %s183
      %s201 = sphi 0, %s201
      %s203 = sphi 0, %s201
      %s204 = sphi 0, %s203
      %s218 = sphi 0, %s204
      %s222 = sphi 0, %s222
      %s224 = sphi 0, %s222
      %s225 = sphi 0, %s224
      %s239 = sphi 0, %s225
      %s243 = sphi 0, %s243
      %s245 = sphi 0, %s243
      %s246 = sphi 0, %s245
      %s260 = sphi 0, %s246
      %s266 = sphi 0, %s268
      %s269 = sphi 0, %s266
      %s270 = sphi 0, %s269
      %s286 = sphi 0, %s270
    $region4: #{tpu_custom_call.1} parent=1 // loop_header_branch
      %23 = sbr.rel (%p21) target = $region8
    $region5: #{tpu_custom_call.1} parent=1 // loop_body
      %s25 = ssub.s32 %s20, 1
      %s26 = ssub.s32 %s20, 2
      %s27 = sadd.s32 %s20, 1
      %s28 = ssub.s32 %s20, %s27
      %p29 = scmp.eq.s32.totalorder %s28, 0
      %s31 = sadd.s32 %s30, 1
      %s32 = scalar_select %p29, %s30, %s31
      %p35 = pneg %p29
      %p36 = scmp.eq.s32.totalorder %s20, 1
      %p37 = por %p35, %p36
      %p38 = scmp.ne.s32.totalorder %s30, %s33
      %p39 = scmp.eq.s32.totalorder %s20, 0
      %p40 = por %p38, %p39
      %p41 = scmp.ne.s32.totalorder %s30, %s33
      %p42 = scmp.eq.s32.totalorder %s25, 1
      %p43 = por %p41, %p42
      %p44 = scmp.ne.s32.totalorder %s33, %s34
      %p45 = scmp.eq.s32.totalorder %s25, 0
      %p46 = por %p44, %p45
      %p47 = scmp.ne.s32.totalorder %s33, %s34
      %p48 = scmp.eq.s32.totalorder %s26, 1
      %p49 = por %p47, %p48
      %p51 = scmp.ne.s32.totalorder %s34, %s50
      %p52 = scmp.eq.s32.totalorder %s26, 0
      %p53 = por %p51, %p52
      %s55 = sadd.s32 %s54, 1
      %p58 = scmp.eq.s32.totalorder %s20, 1
      %p59 = scmp.ne.s32.totalorder %s54, %s56
      %p60 = scmp.eq.s32.totalorder %s20, 0
      %p61 = por %p59, %p60
      %p62 = scmp.ne.s32.totalorder %s54, %s56
      %p63 = scmp.eq.s32.totalorder %s25, 1
      %p64 = por %p62, %p63
      %p65 = scmp.ne.s32.totalorder %s56, %s57
      %p66 = scmp.eq.s32.totalorder %s25, 0
      %p67 = por %p65, %p66
      %p68 = scmp.ne.s32.totalorder %s56, %s57
      %p69 = scmp.eq.s32.totalorder %s26, 1
      %p70 = por %p68, %p69
      %p72 = scmp.ne.s32.totalorder %s57, %s71
      %p73 = scmp.eq.s32.totalorder %s26, 0
      %p74 = por %p72, %p73
      %s76 = sadd.s32 %s75, 1
      %p79 = scmp.eq.s32.totalorder %s20, 1
      %p80 = scmp.ne.s32.totalorder %s75, %s77
      %p81 = scmp.eq.s32.totalorder %s20, 0
      %p82 = por %p80, %p81
      %p83 = scmp.ne.s32.totalorder %s75, %s77
      %p84 = scmp.eq.s32.totalorder %s25, 1
      %p85 = por %p83, %p84
      %p86 = scmp.ne.s32.totalorder %s77, %s78
      %p87 = scmp.eq.s32.totalorder %s25, 0
      %p88 = por %p86, %p87
      %p89 = scmp.ne.s32.totalorder %s77, %s78
      %p90 = scmp.eq.s32.totalorder %s26, 1
      %p91 = por %p89, %p90
      %p93 = scmp.ne.s32.totalorder %s78, %s92
      %p94 = scmp.eq.s32.totalorder %s26, 0
      %p95 = por %p93, %p94
      %s97 = sadd.s32 %s96, 1
      %p100 = scmp.eq.s32.totalorder %s20, 1
      %p101 = scmp.ne.s32.totalorder %s96, %s98
      %p102 = scmp.eq.s32.totalorder %s20, 0
      %p103 = por %p101, %p102
      %p104 = scmp.ne.s32.totalorder %s96, %s98
      %p105 = scmp.eq.s32.totalorder %s25, 1
      %p106 = por %p104, %p105
      %p107 = scmp.ne.s32.totalorder %s98, %s99
      %p108 = scmp.eq.s32.totalorder %s25, 0
      %p109 = por %p107, %p108
      %p110 = scmp.ne.s32.totalorder %s98, %s99
      %p111 = scmp.eq.s32.totalorder %s26, 1
      %p112 = por %p110, %p111
      %p114 = scmp.ne.s32.totalorder %s99, %s113
      %p115 = scmp.eq.s32.totalorder %s26, 0
      %p116 = por %p114, %p115
      %s118 = sadd.s32 %s117, 1
      %p121 = scmp.eq.s32.totalorder %s20, 1
      %p122 = scmp.ne.s32.totalorder %s117, %s119
      %p123 = scmp.eq.s32.totalorder %s20, 0
      %p124 = por %p122, %p123
      %p125 = scmp.ne.s32.totalorder %s117, %s119
      %p126 = scmp.eq.s32.totalorder %s25, 1
      %p127 = por %p125, %p126
      %p128 = scmp.ne.s32.totalorder %s119, %s120
      %p129 = scmp.eq.s32.totalorder %s25, 0
      %p130 = por %p128, %p129
      %p131 = scmp.ne.s32.totalorder %s119, %s120
      %p132 = scmp.eq.s32.totalorder %s26, 1
      %p133 = por %p131, %p132
      %p135 = scmp.ne.s32.totalorder %s120, %s134
      %p136 = scmp.eq.s32.totalorder %s26, 0
      %p137 = por %p135, %p136
      %s139 = sadd.s32 %s138, 1
      %p142 = scmp.eq.s32.totalorder %s20, 1
      %p143 = scmp.ne.s32.totalorder %s138, %s140
      %p144 = scmp.eq.s32.totalorder %s20, 0
      %p145 = por %p143, %p144
      %p146 = scmp.ne.s32.totalorder %s138, %s140
      %p147 = scmp.eq.s32.totalorder %s25, 1
      %p148 = por %p146, %p147
      %p149 = scmp.ne.s32.totalorder %s140, %s141
      %p150 = scmp.eq.s32.totalorder %s25, 0
      %p151 = por %p149, %p150
      %p152 = scmp.ne.s32.totalorder %s140, %s141
      %p153 = scmp.eq.s32.totalorder %s26, 1
      %p154 = por %p152, %p153
      %p156 = scmp.ne.s32.totalorder %s141, %s155
      %p157 = scmp.eq.s32.totalorder %s26, 0
      %p158 = por %p156, %p157
      %s160 = sadd.s32 %s159, 1
      %p163 = scmp.eq.s32.totalorder %s20, 1
      %p164 = scmp.ne.s32.totalorder %s159, %s161
      %p165 = scmp.eq.s32.totalorder %s20, 0
      %p166 = por %p164, %p165
      %p167 = scmp.ne.s32.totalorder %s159, %s161
      %p168 = scmp.eq.s32.totalorder %s25, 1
      %p169 = por %p167, %p168
      %p170 = scmp.ne.s32.totalorder %s161, %s162
      %p171 = scmp.eq.s32.totalorder %s25, 0
      %p172 = por %p170, %p171
      %p173 = scmp.ne.s32.totalorder %s161, %s162
      %p174 = scmp.eq.s32.totalorder %s26, 1
      %p175 = por %p173, %p174
      %p177 = scmp.ne.s32.totalorder %s162, %s176
      %p178 = scmp.eq.s32.totalorder %s26, 0
      %p179 = por %p177, %p178
      %s181 = sadd.s32 %s180, 1
      %p184 = scmp.eq.s32.totalorder %s20, 1
      %p185 = scmp.ne.s32.totalorder %s180, %s182
      %p186 = scmp.eq.s32.totalorder %s20, 0
      %p187 = por %p185, %p186
      %p188 = scmp.ne.s32.totalorder %s180, %s182
      %p189 = scmp.eq.s32.totalorder %s25, 1
      %p190 = por %p188, %p189
      %p191 = scmp.ne.s32.totalorder %s182, %s183
      %p192 = scmp.eq.s32.totalorder %s25, 0
      %p193 = por %p191, %p192
      %p194 = scmp.ne.s32.totalorder %s182, %s183
      %p195 = scmp.eq.s32.totalorder %s26, 1
      %p196 = por %p194, %p195
      %p198 = scmp.ne.s32.totalorder %s183, %s197
      %p199 = scmp.eq.s32.totalorder %s26, 0
      %p200 = por %p198, %p199
      %s202 = sadd.s32 %s201, 1
      %p205 = scmp.eq.s32.totalorder %s20, 1
      %p206 = scmp.ne.s32.totalorder %s201, %s203
      %p207 = scmp.eq.s32.totalorder %s20, 0
      %p208 = por %p206, %p207
      %p209 = scmp.ne.s32.totalorder %s201, %s203
      %p210 = scmp.eq.s32.totalorder %s25, 1
      %p211 = por %p209, %p210
      %p212 = scmp.ne.s32.totalorder %s203, %s204
      %p213 = scmp.eq.s32.totalorder %s25, 0
      %p214 = por %p212, %p213
      %p215 = scmp.ne.s32.totalorder %s203, %s204
      %p216 = scmp.eq.s32.totalorder %s26, 1
      %p217 = por %p215, %p216
      %p219 = scmp.ne.s32.totalorder %s204, %s218
      %p220 = scmp.eq.s32.totalorder %s26, 0
      %p221 = por %p219, %p220
      %s223 = sadd.s32 %s222, 1
      %p226 = scmp.eq.s32.totalorder %s20, 1
      %p227 = scmp.ne.s32.totalorder %s222, %s224
      %p228 = scmp.eq.s32.totalorder %s20, 0
      %p229 = por %p227, %p228
      %p230 = scmp.ne.s32.totalorder %s222, %s224
      %p231 = scmp.eq.s32.totalorder %s25, 1
      %p232 = por %p230, %p231
      %p233 = scmp.ne.s32.totalorder %s224, %s225
      %p234 = scmp.eq.s32.totalorder %s25, 0
      %p235 = por %p233, %p234
      %p236 = scmp.ne.s32.totalorder %s224, %s225
      %p237 = scmp.eq.s32.totalorder %s26, 1
      %p238 = por %p236, %p237
      %p240 = scmp.ne.s32.totalorder %s225, %s239
      %p241 = scmp.eq.s32.totalorder %s26, 0
      %p242 = por %p240, %p241
      %s244 = sadd.s32 %s243, 1
      %p247 = scmp.eq.s32.totalorder %s20, 1
      %p248 = scmp.ne.s32.totalorder %s243, %s245
      %p249 = scmp.eq.s32.totalorder %s20, 0
      %p250 = por %p248, %p249
      %p251 = scmp.ne.s32.totalorder %s243, %s245
      %p252 = scmp.eq.s32.totalorder %s25, 1
      %p253 = por %p251, %p252
      %p254 = scmp.ne.s32.totalorder %s245, %s246
      %p255 = scmp.eq.s32.totalorder %s25, 0
      %p256 = por %p254, %p255
      %p257 = scmp.ne.s32.totalorder %s245, %s246
      %p258 = scmp.eq.s32.totalorder %s26, 1
      %p259 = por %p257, %p258
      %p261 = scmp.ne.s32.totalorder %s246, %s260
      %p262 = scmp.eq.s32.totalorder %s26, 0
      %p263 = por %p261, %p262
      %s264 = ssub.s32 %s20, %s27
      %p265 = scmp.eq.s32.totalorder %s264, 0
      %s267 = sadd.s32 %s266, 1
      %s268 = scalar_select %p265, %s266, %s267
      %p271 = pneg %p265
      %p272 = scmp.eq.s32.totalorder %s20, 1
      %p273 = por %p271, %p272
      %p274 = scmp.ne.s32.totalorder %s266, %s269
      %p275 = scmp.eq.s32.totalorder %s20, 0
      %p276 = por %p274, %p275
      %p277 = scmp.ne.s32.totalorder %s266, %s269
      %p278 = scmp.eq.s32.totalorder %s25, 1
      %p279 = por %p277, %p278
      %p280 = scmp.ne.s32.totalorder %s269, %s270
      %p281 = scmp.eq.s32.totalorder %s25, 0
      %p282 = por %p280, %p281
      %p283 = scmp.ne.s32.totalorder %s269, %s270
      %p284 = scmp.eq.s32.totalorder %s26, 1
      %p285 = por %p283, %p284
      %p287 = scmp.ne.s32.totalorder %s270, %s286
      %p288 = scmp.eq.s32.totalorder %s26, 0
      %p289 = por %p287, %p288
      %p290 = scmp.le.s32.totalorder 1, %s20
      %p291 = scmp.lt.s32.totalorder %s20, 3
      %p292 = pnand %p290, %p291
      %p293 = pneg %p292
      // Predicated region
      $region9: #{tpu_custom_call.1} parent=5 // pred_check
        _
      $region10: #{tpu_custom_call.1} parent=5 // pred_check_branch
        %295 = sbr.rel (%p292) target = $region12
      $region11: #{tpu_custom_call.1} parent=5 // pred_region
        %s296 = ssub.s32 %s20, 1
        // Predicated region
        $region13: #{tpu_custom_call.1} parent=11 // pred_check
          %p297 = pneg %p67
        $region14: #{tpu_custom_call.1} parent=11 // pred_check_branch
          %299 = sbr.rel (%p297) target = $region16
        $region15: #{tpu_custom_call.1} parent=11 // pred_region
          _
        $region16: #{tpu_custom_call.1} parent=11 // pred_fallthru
          _
        // Predicated region
        $region17: #{tpu_custom_call.1} parent=11 // pred_check
          %p300 = pneg %p88
        $region18: #{tpu_custom_call.1} parent=11 // pred_check_branch
          %302 = sbr.rel (%p300) target = $region20
        $region19: #{tpu_custom_call.1} parent=11 // pred_region
          _
        $region20: #{tpu_custom_call.1} parent=11 // pred_fallthru
          _
        // Predicated region
        $region21: #{tpu_custom_call.1} parent=11 // pred_check
          %p303 = pneg %p109
        $region22: #{tpu_custom_call.1} parent=11 // pred_check_branch
          %305 = sbr.rel (%p303) target = $region24
        $region23: #{tpu_custom_call.1} parent=11 // pred_region
          _
        $region24: #{tpu_custom_call.1} parent=11 // pred_fallthru
          _
        // Predicated region
        $region25: #{tpu_custom_call.1} parent=11 // pred_check
          %p306 = pneg %p130
        $region26: #{tpu_custom_call.1} parent=11 // pred_check_branch
          %308 = sbr.rel (%p306) target = $region28
        $region27: #{tpu_custom_call.1} parent=11 // pred_region
          _
        $region28: #{tpu_custom_call.1} parent=11 // pred_fallthru
          _
        // Predicated region
        $region29: #{tpu_custom_call.1} parent=11 // pred_check
          %p309 = pneg %p151
        $region30: #{tpu_custom_call.1} parent=11 // pred_check_branch
          %311 = sbr.rel (%p309) target = $region32
        $region31: #{tpu_custom_call.1} parent=11 // pred_region
          _
        $region32: #{tpu_custom_call.1} parent=11 // pred_fallthru
          _
        // Predicated region
        $region33: #{tpu_custom_call.1} parent=11 // pred_check
          %p312 = pneg %p172
        $region34: #{tpu_custom_call.1} parent=11 // pred_check_branch
          %314 = sbr.rel (%p312) target = $region36
        $region35: #{tpu_custom_call.1} parent=11 // pred_region
          _
        $region36: #{tpu_custom_call.1} parent=11 // pred_fallthru
          _
        // Predicated region
        $region37: #{tpu_custom_call.1} parent=11 // pred_check
          %p315 = pneg %p193
        $region38: #{tpu_custom_call.1} parent=11 // pred_check_branch
          %317 = sbr.rel (%p315) target = $region40
        $region39: #{tpu_custom_call.1} parent=11 // pred_region
          _
        $region40: #{tpu_custom_call.1} parent=11 // pred_fallthru
          _
        // Predicated region
        $region41: #{tpu_custom_call.1} parent=11 // pred_check
          %p318 = pneg %p214
        $region42: #{tpu_custom_call.1} parent=11 // pred_check_branch
          %320 = sbr.rel (%p318) target = $region44
        $region43: #{tpu_custom_call.1} parent=11 // pred_region
          _
        $region44: #{tpu_custom_call.1} parent=11 // pred_fallthru
          _
        // Predicated region
        $region45: #{tpu_custom_call.1} parent=11 // pred_check
          %p321 = pneg %p235
        $region46: #{tpu_custom_call.1} parent=11 // pred_check_branch
          %323 = sbr.rel (%p321) target = $region48
        $region47: #{tpu_custom_call.1} parent=11 // pred_region
          _
        $region48: #{tpu_custom_call.1} parent=11 // pred_fallthru
          _
        // Predicated region
        $region49: #{tpu_custom_call.1} parent=11 // pred_check
          %p324 = pneg %p256
        $region50: #{tpu_custom_call.1} parent=11 // pred_check_branch
          %326 = sbr.rel (%p324) target = $region52
        $region51: #{tpu_custom_call.1} parent=11 // pred_region
          _
        $region52: #{tpu_custom_call.1} parent=11 // pred_fallthru
          _
      $region12: #{tpu_custom_call.1} parent=5 // pred_fallthru
        _
      %p327 = scmp.lt.s32.totalorder %s20, 2
      // Predicated region
      $region53: #{tpu_custom_call.1} parent=5 // pred_check
        %p328 = pneg %p327
      $region54: #{tpu_custom_call.1} parent=5 // pred_check_branch
        %330 = sbr.rel (%p328) target = $region56
      $region55: #{tpu_custom_call.1} parent=5 // pred_region
        // Predicated region
        $region57: #{tpu_custom_call.1} parent=55 // pred_check
          %p331 = pneg %p40
        $region58: #{tpu_custom_call.1} parent=55 // pred_check_branch
          %333 = sbr.rel (%p331) target = $region60
        $region59: #{tpu_custom_call.1} parent=55 // pred_region
          %p334 = scmp.lt.s32.totalorder %s20, 1
          %s335 = scalar_select %p334, %s20, 1
          %s336 = smul.addr %s335, 2
          %s337 = smul.addr %s336, 8
          %s338 = scalar_lea.vmem %s0, %s337
        $region60: #{tpu_custom_call.1} parent=55 // pred_fallthru
          _
      $region56: #{tpu_custom_call.1} parent=5 // pred_fallthru
        _
      %p339 = scmp.le.s32.totalorder 1, %s20
      %p340 = scmp.lt.s32.totalorder %s20, 3
      %p341 = pnand %p339, %p340
      %p342 = pneg %p341
      // Predicated region
      $region61: #{tpu_custom_call.1} parent=5 // pred_check
        _
      $region62: #{tpu_custom_call.1} parent=5 // pred_check_branch
        %344 = sbr.rel (%p341) target = $region64
      $region63: #{tpu_custom_call.1} parent=5 // pred_region
        %s345 = ssub.s32 %s20, 1
        %p346 = scmp.lt.s32.totalorder %s25, 1
        %s347 = scalar_select %p346, %s25, 1
        %s348 = smul.addr %s347, 2
        %s349 = smul.addr %s348, 8
        %s350 = scalar_lea.vmem %s0, %s349
        %p351 = pneg %p46
        %p352 = pneg %p43
        %p353 = pneg %p67
        %p354 = pneg %p64
        %p355 = pneg %p88
        %p356 = pneg %p85
        %p357 = pneg %p109
        %p358 = pneg %p106
        %p359 = pneg %p130
        %p360 = pneg %p127
        %p361 = pneg %p151
        %p362 = pneg %p148
        %p363 = pneg %p172
        %p364 = pneg %p169
        %p365 = pneg %p193
        %p366 = pneg %p190
        %p367 = pneg %p214
        %p368 = pneg %p211
        %p369 = pneg %p235
        %p370 = pneg %p232
        %p371 = pneg %p256
        %p372 = pneg %p253
        %p373 = pneg %p282
        %p374 = pneg %p279
        %s375 = sand.u32 %s269, 1
        %s376 = scalar_lea.sflag [#allocation4], %s375
        %s377 = sand.u32 %s269, 1
        %s378 = smul.addr %s377, 16
        %s379 = scalar_lea.vmem [#allocation3], %s378
        %p380 = scmp.lt.s32.totalorder %s25, 1
        %s381 = scalar_select %p380, %s25, 1
        %s382 = smul.addr %s381, 2
        %s383 = smul.addr %s382, 8
        %s384 = scalar_lea.vmem %s0, %s383
        %v385 = vld [vmem:[%s384] sm:$0xff]
        %v386 = vld [vmem:[%s384 + $0x8] sm:$0xff]
        %v387 = vld [vmem:[%s1] sm:$0xff]
        %v388 = vld [vmem:[%s1 + $0x8] sm:$0xff]
        %v389 = vld [vmem:[%s2] sm:$0xff]
        %v390 = vld [vmem:[%s2 + $0x8] sm:$0xff]
        %392 = vset.pattern.permute.xlu0 0
        %393 = vperm.xlu0 %392, %v389
        %v394 = vpop.permute.xlu0 %393
        %397 = vset.pattern.permute.xlu0 0
        %398 = vperm.xlu0 %397, %v390
        %v399 = vpop.permute.xlu0 %398
        %vm401 = vcmask 64512
        %v403 = vsel %vm401, %v387, 0
        %v406 = vsel %vm401, %v388, 0
        %408 = vmatprep.subr.mxu0 0.0
        %409 = vmatpush1.msra.mxu0 0.0
        %410 = vmatprep.subr.mxu0 0.0
        %411 = vmatpush1.msra.mxu0 0.0
        %412 = vmatprep.subr.mxu0 0.0
        %413 = vmatpush1.msra.mxu0 0.0
        %414 = vmatprep.subr.mxu0 0.0
        %415 = vmatpush1.msra.mxu0 0.0
        %416 = vmatprep.subr.mxu0 0.0
        %417 = vmatpush1.msra.mxu0 0.0
        %418 = vmatprep.subr.mxu0 0.0
        %419 = vmatpush1.msra.mxu0 0.0
        %420 = vmatprep.subr.mxu0 0.0
        %421 = vmatpush1.msra.mxu0 0.0
        %422 = vmatprep.subr.mxu0 0.0
        %423 = vmatpush1.msra.mxu0 0.0
        %424 = vmatprep.subr.mxu0 0.0
        %425 = vmatpush1.msra.mxu0 0.0
        %426 = vmatprep.subr.mxu0 0.0
        %427 = vmatpush1.msra.mxu0 0.0
        %428 = vmatprep.subr.mxu0 0.0
        %429 = vmatpush1.msra.mxu0 0.0
        %430 = vmatprep.subr.mxu0 0.0
        %431 = vmatpush1.msra.mxu0 0.0
        %432 = vmatprep.subr.mxu0 0.0
        %433 = vmatpush1.msra.mxu0 0.0
        %434 = vmatprep.subr.mxu0 0.0
        %435 = vmatpush1.msra.mxu0 0.0
        %436 = vmatprep.subr.mxu0 0.0
        %437 = vmatpush1.msra.mxu0 0.0
        %438 = vmatprep.subr.mxu0 %v386
        %439 = vmatpush1.msra.mxu0 %v385
        %440 = vmatprep.subr.mxu0 0.0
        %441 = vmatpush2.msra.mxu0 0.0
        %442 = vmatprep.subr.mxu0 0.0
        %443 = vmatpush2.msra.mxu0 0.0
        %444 = vmatprep.subr.mxu0 0.0
        %445 = vmatpush2.msra.mxu0 0.0
        %446 = vmatprep.subr.mxu0 0.0
        %447 = vmatpush2.msra.mxu0 0.0
        %448 = vmatprep.subr.mxu0 0.0
        %449 = vmatpush2.msra.mxu0 0.0
        %450 = vmatprep.subr.mxu0 0.0
        %451 = vmatpush2.msra.mxu0 0.0
        %452 = vmatprep.subr.mxu0 0.0
        %453 = vmatpush2.msra.mxu0 0.0
        %454 = vmatprep.subr.mxu0 0.0
        %455 = vmatpush2.msra.mxu0 0.0
        %456 = vmatprep.subr.mxu0 0.0
        %457 = vmatpush2.msra.mxu0 0.0
        %458 = vmatprep.subr.mxu0 0.0
        %459 = vmatpush2.msra.mxu0 0.0
        %460 = vmatprep.subr.mxu0 0.0
        %461 = vmatpush2.msra.mxu0 0.0
        %462 = vmatprep.subr.mxu0 0.0
        %463 = vmatpush2.msra.mxu0 0.0
        %464 = vmatprep.subr.mxu0 0.0
        %465 = vmatpush2.msra.mxu0 0.0
        %466 = vmatprep.subr.mxu0 0.0
        %467 = vmatpush2.msra.mxu0 0.0
        %468 = vmatprep.subr.mxu0 0.0
        %469 = vmatpush2.msra.mxu0 0.0
        %470 = vmatprep.subr.mxu0 0.0
        %471 = vmatpush2.msra.mxu0 0.0
        %472 = vmatprep.mubr.f32.mxu0 0.0
        %473 = vmatmul.mubr.f32.gmra.mxu0 %v403
        %v474 = vpop.f32.mrf.mxu0
        %v475 = vadd.f32 %v394, %v474
        %v476 = vpop.f32.mrf.mxu0
        %v477 = vadd.f32 %v394, %v476
        %478 = vmatprep.mubr.f32.mxu0 0.0
        %479 = vmatmul.mubr.f32.gmra.mxu0 %v406
        %v480 = vpop.f32.mrf.mxu0
        %v481 = vadd.f32 %v399, %v480
        %v482 = vpop.f32.mrf.mxu0
        %v483 = vadd.f32 %v399, %v482
        %484 = vdwg.mxu0
        %v485 = vadd.f32 %v475, 3.0
        %v486 = vadd.f32 %v477, 3.0
        %v487 = vadd.f32 %v481, 3.0
        %v488 = vadd.f32 %v483, 3.0
        %v489 = vmax.f32 %v485, 0.0
        %v490 = vmax.f32 %v486, 0.0
        %v491 = vmax.f32 %v487, 0.0
        %v492 = vmax.f32 %v488, 0.0
        %v493 = vmin.f32 %v489, 6.0
        %v494 = vmin.f32 %v490, 6.0
        %v495 = vmin.f32 %v491, 6.0
        %v496 = vmin.f32 %v492, 6.0
        %v497 = vmul.f32 %v493, 0.16666667
        %v498 = vmul.f32 %v494, 0.16666667
        %v499 = vmul.f32 %v495, 0.16666667
        %v500 = vmul.f32 %v496, 0.16666667
        %v501 = vmul.f32 %v475, %v497
        %v502 = vmul.f32 %v477, %v498
        %v503 = vmul.f32 %v481, %v499
        %v504 = vmul.f32 %v483, %v500
        %505 = vst [vmem:[#allocation2] sm:$0xff] 0.0
        %506 = vst [vmem:[#allocation2 + $0x20] sm:$0xff] 0.0
        %507 = vst [vmem:[#allocation2 + $0x18] sm:$0xff] 0.0
        %508 = vst [vmem:[#allocation2 + $0x38] sm:$0xff] 0.0
        %509 = vst [vmem:[#allocation2 + $0x8] sm:$0xff] %v501
        %510 = vst [vmem:[#allocation2 + $0x10] sm:$0xff] %v502
        %511 = vst [vmem:[#allocation2 + $0x28] sm:$0xff] %v503
        %512 = vst [vmem:[#allocation2 + $0x30] sm:$0xff] %v504
        %v513 = vlaneseq
        %v514 = vand.u32 %v513, 127
        %v515 = vadd.s32 %v514, 128
        %vm516 = vcmp.lt.s32.totalorder %v514, 0
        %v517 = vsub.s32 0, %v514
        %v518 = vsel %vm516, %v517, %v514
        %v519 = vshrl.u32 %v518, 4
        %v520 = vand.u32 %v518, 15
        %v521 = vsub.s32 0, %v520
        %v522 = vsel %vm516, %v521, %v520
        %vm523 = vcmp.lt.s32.totalorder %v515, 0
        %v524 = vsub.s32 0, %v515
        %v525 = vsel %vm523, %v524, %v515
        %v526 = vshrl.u32 %v525, 4
        %v527 = vand.u32 %v525, 15
        %v528 = vsub.s32 0, %v527
        %v529 = vsel %vm523, %v528, %v527
        %vm530 = vcmp.ne.s32.totalorder %v522, 0
        %vm531 = vcmp.ne.s32.totalorder %v529, 0
        %vm532 = vcmp.lt.s32.totalorder %v522, 0
        %vm533 = vcmp.lt.s32.totalorder %v529, 0
        %vm534 = vmand %vm532, %vm530
        %vm535 = vmand %vm533, %vm531
        %v536 = vadd.s32 %v522, 16
        %v537 = vadd.s32 %v529, 16
        %v538 = vsel %vm534, %v536, %v522
        %v539 = vsel %vm535, %v537, %v529
        %v540 = vld [vmem:[%s3] sm:$0xff]
        %v541 = vld [vmem:[%s3 + $0x8] sm:$0xff]
        %v542 = vld [vmem:[#allocation2] sm:$0xff]
        %v543 = vld [vmem:[#allocation2 + $0x8] sm:$0xff]
        %v544 = vld [vmem:[#allocation2 + $0x10] sm:$0xff]
        %v545 = vld [vmem:[#allocation2 + $0x20] sm:$0xff]
        %v546 = vld [vmem:[#allocation2 + $0x28] sm:$0xff]
        %v547 = vld [vmem:[#allocation2 + $0x30] sm:$0xff]
        %v548 = vadd.s32 %v538, 4294967295
        %v549 = vadd.s32 %v539, 4294967295
        %vm550 = vcmp.ge.s32.totalorder %v548, 0
        %vm551 = vcmp.ge.s32.totalorder %v549, 0
        %vm552 = vcmp.lt.s32.totalorder %v548, 16
        %vm553 = vcmp.lt.s32.totalorder %v549, 16
        %vm554 = vmand %vm550, %vm552
        %vm555 = vmand %vm551, %vm553
        %v556 = vsel %vm554, 1, 0
        %v557 = vsel %vm555, 1, 0
        %vm558 = vcmp.eq.s32.totalorder %v556, 1
        %vm559 = vcmp.eq.s32.totalorder %v557, 1
        %566 = vrot.lane.b32.xlu0 %v542, 17
        %v567 = vpop.permute.xlu0 %566
        %568 = vrot.lane.b32.xlu0 %v543, 17
        %v569 = vpop.permute.xlu0 %568
        %570 = vrot.lane.b32.xlu0 %v544, 17
        %v571 = vpop.permute.xlu0 %570
        %572 = vrot.lane.b32.xlu0 %v545, 17
        %v573 = vpop.permute.xlu0 %572
        %574 = vrot.lane.b32.xlu0 %v546, 17
        %v575 = vpop.permute.xlu0 %574
        %576 = vrot.lane.b32.xlu0 %v547, 17
        %v577 = vpop.permute.xlu0 %576
        %vm578 = vcmask 138240
        %v579 = vsel %vm578, %v567, %v569
        %v580 = vsel %vm578, %v569, %v571
        %v581 = vsel %vm578, %v573, %v575
        %v582 = vsel %vm578, %v575, %v577
        %v587 = vsel %vm558, %v579, 0.0
        %v588 = vsel %vm559, %v580, 0.0
        %v589 = vsel %vm558, %v581, 0.0
        %v590 = vsel %vm559, %v582, 0.0
        %592 = vset.pattern.permute.xlu0 0
        %593 = vperm.xlu0 %592, %v540
        %v594 = vpop.permute.xlu0 %593
        %597 = vset.pattern.permute.xlu0 0
        %598 = vperm.xlu0 %597, %v541
        %v599 = vpop.permute.xlu0 %598
        %v601 = vmul.f32 %v587, %v594
        %v602 = vmul.f32 %v588, %v594
        %v603 = vmul.f32 %v589, %v599
        %v604 = vmul.f32 %v590, %v599
        %605 = vset.pattern.permute.xlu0 1
        %606 = vperm.xlu0 %605, %v540
        %v607 = vpop.permute.xlu0 %606
        %609 = vset.pattern.permute.xlu0 1
        %610 = vperm.xlu0 %609, %v541
        %v611 = vpop.permute.xlu0 %610
        %v613 = vmul.f32 %v542, %v607
        %v614 = vmul.f32 %v543, %v607
        %v615 = vmul.f32 %v544, %v607
        %v616 = vmul.f32 %v545, %v611
        %v617 = vmul.f32 %v546, %v611
        %v618 = vmul.f32 %v547, %v611
        %625 = vrot.lane.b32.xlu0 %v613, 16
        %v626 = vpop.permute.xlu0 %625
        %627 = vrot.lane.b32.xlu0 %v614, 16
        %v628 = vpop.permute.xlu0 %627
        %629 = vrot.lane.b32.xlu0 %v615, 16
        %v630 = vpop.permute.xlu0 %629
        %631 = vrot.lane.b32.xlu0 %v616, 16
        %v632 = vpop.permute.xlu0 %631
        %633 = vrot.lane.b32.xlu0 %v617, 16
        %v634 = vpop.permute.xlu0 %633
        %635 = vrot.lane.b32.xlu0 %v618, 16
        %v636 = vpop.permute.xlu0 %635
        %vm637 = vcmask 130048
        %v638 = vsel %vm637, %v626, %v628
        %v639 = vsel %vm637, %v628, %v630
        %v640 = vsel %vm637, %v632, %v634
        %v641 = vsel %vm637, %v634, %v636
        %v646 = vadd.f32 %v601, %v638
        %v647 = vadd.f32 %v602, %v639
        %v648 = vadd.f32 %v603, %v640
        %v649 = vadd.f32 %v604, %v641
        %v650 = vadd.s32 %v538, 1
        %v651 = vadd.s32 %v539, 1
        %vm652 = vcmp.ge.s32.totalorder %v650, 0
        %vm653 = vcmp.ge.s32.totalorder %v651, 0
        %vm654 = vcmp.lt.s32.totalorder %v650, 16
        %vm655 = vcmp.lt.s32.totalorder %v651, 16
        %vm656 = vmand %vm652, %vm654
        %vm657 = vmand %vm653, %vm655
        %v658 = vsel %vm656, 1, 0
        %v659 = vsel %vm657, 1, 0
        %vm660 = vcmp.eq.s32.totalorder %v658, 1
        %vm661 = vcmp.eq.s32.totalorder %v659, 1
        %662 = vrot.lane.b32.xlu0 %v542, 15
        %v663 = vpop.permute.xlu0 %662
        %664 = vrot.lane.b32.xlu0 %v543, 15
        %v665 = vpop.permute.xlu0 %664
        %666 = vrot.lane.b32.xlu0 %v544, 15
        %v667 = vpop.permute.xlu0 %666
        %668 = vrot.lane.b32.xlu0 %v545, 15
        %v669 = vpop.permute.xlu0 %668
        %670 = vrot.lane.b32.xlu0 %v546, 15
        %v671 = vpop.permute.xlu0 %670
        %672 = vrot.lane.b32.xlu0 %v547, 15
        %v673 = vpop.permute.xlu0 %672
        %vm674 = vcmask 121856
        %v675 = vsel %vm674, %v663, %v665
        %v676 = vsel %vm674, %v665, %v667
        %v677 = vsel %vm674, %v669, %v671
        %v678 = vsel %vm674, %v671, %v673
        %v683 = vsel %vm660, %v675, 0.0
        %v684 = vsel %vm661, %v676, 0.0
        %v685 = vsel %vm660, %v677, 0.0
        %v686 = vsel %vm661, %v678, 0.0
        %687 = vset.pattern.permute.xlu0 2
        %688 = vperm.xlu0 %687, %v540
        %v689 = vpop.permute.xlu0 %688
        %691 = vset.pattern.permute.xlu0 2
        %692 = vperm.xlu0 %691, %v541
        %v693 = vpop.permute.xlu0 %692
        %v695 = vmul.f32 %v683, %v689
        %v696 = vmul.f32 %v684, %v689
        %v697 = vmul.f32 %v685, %v693
        %v698 = vmul.f32 %v686, %v693
        %v699 = vadd.f32 %v646, %v695
        %v700 = vadd.f32 %v647, %v696
        %v701 = vadd.f32 %v648, %v697
        %v702 = vadd.f32 %v649, %v698
        %703 = vrot.lane.b32.xlu0 %v542, 1
        %v704 = vpop.permute.xlu0 %703
        %705 = vrot.lane.b32.xlu0 %v543, 1
        %v706 = vpop.permute.xlu0 %705
        %707 = vrot.lane.b32.xlu0 %v544, 1
        %v708 = vpop.permute.xlu0 %707
        %709 = vrot.lane.b32.xlu0 %v545, 1
        %v710 = vpop.permute.xlu0 %709
        %711 = vrot.lane.b32.xlu0 %v546, 1
        %v712 = vpop.permute.xlu0 %711
        %713 = vrot.lane.b32.xlu0 %v547, 1
        %v714 = vpop.permute.xlu0 %713
        %vm715 = vcmask 7168
        %v716 = vsel %vm715, %v704, %v706
        %v717 = vsel %vm715, %v706, %v708
        %v718 = vsel %vm715, %v710, %v712
        %v719 = vsel %vm715, %v712, %v714
        %v724 = vsel %vm558, %v716, 0.0
        %v725 = vsel %vm559, %v717, 0.0
        %v726 = vsel %vm558, %v718, 0.0
        %v727 = vsel %vm559, %v719, 0.0
        %728 = vset.pattern.permute.xlu0 3
        %729 = vperm.xlu0 %728, %v540
        %v730 = vpop.permute.xlu0 %729
        %732 = vset.pattern.permute.xlu0 3
        %733 = vperm.xlu0 %732, %v541
        %v734 = vpop.permute.xlu0 %733
        %v736 = vmul.f32 %v724, %v730
        %v737 = vmul.f32 %v725, %v730
        %v738 = vmul.f32 %v726, %v734
        %v739 = vmul.f32 %v727, %v734
        %v740 = vadd.f32 %v699, %v736
        %v741 = vadd.f32 %v700, %v737
        %v742 = vadd.f32 %v701, %v738
        %v743 = vadd.f32 %v702, %v739
        %744 = vset.pattern.permute.xlu0 4
        %745 = vperm.xlu0 %744, %v540
        %v746 = vpop.permute.xlu0 %745
        %748 = vset.pattern.permute.xlu0 4
        %749 = vperm.xlu0 %748, %v541
        %v750 = vpop.permute.xlu0 %749
        %v752 = vmul.f32 %v543, %v746
        %v753 = vmul.f32 %v544, %v746
        %v754 = vmul.f32 %v546, %v750
        %v755 = vmul.f32 %v547, %v750
        %v756 = vadd.f32 %v740, %v752
        %v757 = vadd.f32 %v741, %v753
        %v758 = vadd.f32 %v742, %v754
        %v759 = vadd.f32 %v743, %v755
        %v760 = vld [vmem:[#allocation2 + $0x8] sm:$0xff]
        %v761 = vld [vmem:[#allocation2 + $0x10] sm:$0xff]
        %v762 = vld [vmem:[#allocation2 + $0x18] sm:$0xff]
        %v763 = vld [vmem:[#allocation2 + $0x28] sm:$0xff]
        %v764 = vld [vmem:[#allocation2 + $0x30] sm:$0xff]
        %v765 = vld [vmem:[#allocation2 + $0x38] sm:$0xff]
        %772 = vrot.lane.b32.xlu0 %v760, 127
        %v773 = vpop.permute.xlu0 %772
        %774 = vrot.lane.b32.xlu0 %v761, 127
        %v775 = vpop.permute.xlu0 %774
        %776 = vrot.lane.b32.xlu0 %v762, 127
        %v777 = vpop.permute.xlu0 %776
        %778 = vrot.lane.b32.xlu0 %v763, 127
        %v779 = vpop.permute.xlu0 %778
        %780 = vrot.lane.b32.xlu0 %v764, 127
        %v781 = vpop.permute.xlu0 %780
        %782 = vrot.lane.b32.xlu0 %v765, 127
        %v783 = vpop.permute.xlu0 %782
        %vm784 = vcmask 1039360
        %v785 = vsel %vm784, %v773, %v775
        %v786 = vsel %vm784, %v775, %v777
        %v787 = vsel %vm784, %v779, %v781
        %v788 = vsel %vm784, %v781, %v783
        %v793 = vsel %vm660, %v785, 0.0
        %v794 = vsel %vm661, %v786, 0.0
        %v795 = vsel %vm660, %v787, 0.0
        %v796 = vsel %vm661, %v788, 0.0
        %797 = vset.pattern.permute.xlu0 5
        %798 = vperm.xlu0 %797, %v540
        %v799 = vpop.permute.xlu0 %798
        %801 = vset.pattern.permute.xlu0 5
        %802 = vperm.xlu0 %801, %v541
        %v803 = vpop.permute.xlu0 %802
        %v805 = vmul.f32 %v793, %v799
        %v806 = vmul.f32 %v794, %v799
        %v807 = vmul.f32 %v795, %v803
        %v808 = vmul.f32 %v796, %v803
        %v809 = vadd.f32 %v756, %v805
        %v810 = vadd.f32 %v757, %v806
        %v811 = vadd.f32 %v758, %v807
        %v812 = vadd.f32 %v759, %v808
        %813 = vrot.lane.b32.xlu0 %v760, 113
        %v814 = vpop.permute.xlu0 %813
        %815 = vrot.lane.b32.xlu0 %v761, 113
        %v816 = vpop.permute.xlu0 %815
        %817 = vrot.lane.b32.xlu0 %v762, 113
        %v818 = vpop.permute.xlu0 %817
        %819 = vrot.lane.b32.xlu0 %v763, 113
        %v820 = vpop.permute.xlu0 %819
        %821 = vrot.lane.b32.xlu0 %v764, 113
        %v822 = vpop.permute.xlu0 %821
        %823 = vrot.lane.b32.xlu0 %v765, 113
        %v824 = vpop.permute.xlu0 %823
        %vm825 = vcmask 924672
        %v826 = vsel %vm825, %v814, %v816
        %v827 = vsel %vm825, %v816, %v818
        %v828 = vsel %vm825, %v820, %v822
        %v829 = vsel %vm825, %v822, %v824
        %v834 = vsel %vm558, %v826, 0.0
        %v835 = vsel %vm559, %v827, 0.0
        %v836 = vsel %vm558, %v828, 0.0
        %v837 = vsel %vm559, %v829, 0.0
        %838 = vset.pattern.permute.xlu0 6
        %839 = vperm.xlu0 %838, %v540
        %v840 = vpop.permute.xlu0 %839
        %842 = vset.pattern.permute.xlu0 6
        %843 = vperm.xlu0 %842, %v541
        %v844 = vpop.permute.xlu0 %843
        %v846 = vmul.f32 %v834, %v840
        %v847 = vmul.f32 %v835, %v840
        %v848 = vmul.f32 %v836, %v844
        %v849 = vmul.f32 %v837, %v844
        %v850 = vadd.f32 %v809, %v846
        %v851 = vadd.f32 %v810, %v847
        %v852 = vadd.f32 %v811, %v848
        %v853 = vadd.f32 %v812, %v849
        %854 = vset.pattern.permute.xlu0 7
        %855 = vperm.xlu0 %854, %v540
        %v856 = vpop.permute.xlu0 %855
        %858 = vset.pattern.permute.xlu0 7
        %859 = vperm.xlu0 %858, %v541
        %v860 = vpop.permute.xlu0 %859
        %v862 = vmul.f32 %v760, %v856
        %v863 = vmul.f32 %v761, %v856
        %v864 = vmul.f32 %v762, %v856
        %v865 = vmul.f32 %v763, %v860
        %v866 = vmul.f32 %v764, %v860
        %v867 = vmul.f32 %v765, %v860
        %874 = vrot.lane.b32.xlu0 %v862, 112
        %v875 = vpop.permute.xlu0 %874
        %876 = vrot.lane.b32.xlu0 %v863, 112
        %v877 = vpop.permute.xlu0 %876
        %878 = vrot.lane.b32.xlu0 %v864, 112
        %v879 = vpop.permute.xlu0 %878
        %880 = vrot.lane.b32.xlu0 %v865, 112
        %v881 = vpop.permute.xlu0 %880
        %882 = vrot.lane.b32.xlu0 %v866, 112
        %v883 = vpop.permute.xlu0 %882
        %884 = vrot.lane.b32.xlu0 %v867, 112
        %v885 = vpop.permute.xlu0 %884
        %vm886 = vcmask 916480
        %v887 = vsel %vm886, %v875, %v877
        %v888 = vsel %vm886, %v877, %v879
        %v889 = vsel %vm886, %v881, %v883
        %v890 = vsel %vm886, %v883, %v885
        %v895 = vadd.f32 %v850, %v887
        %v896 = vadd.f32 %v851, %v888
        %v897 = vadd.f32 %v852, %v889
        %v898 = vadd.f32 %v853, %v890
        %899 = vrot.lane.b32.xlu0 %v760, 111
        %v900 = vpop.permute.xlu0 %899
        %901 = vrot.lane.b32.xlu0 %v761, 111
        %v902 = vpop.permute.xlu0 %901
        %903 = vrot.lane.b32.xlu0 %v762, 111
        %v904 = vpop.permute.xlu0 %903
        %905 = vrot.lane.b32.xlu0 %v763, 111
        %v906 = vpop.permute.xlu0 %905
        %907 = vrot.lane.b32.xlu0 %v764, 111
        %v908 = vpop.permute.xlu0 %907
        %909 = vrot.lane.b32.xlu0 %v765, 111
        %v910 = vpop.permute.xlu0 %909
        %vm911 = vcmask 908288
        %v912 = vsel %vm911, %v900, %v902
        %v913 = vsel %vm911, %v902, %v904
        %v914 = vsel %vm911, %v906, %v908
        %v915 = vsel %vm911, %v908, %v910
        %v920 = vsel %vm660, %v912, 0.0
        %v921 = vsel %vm661, %v913, 0.0
        %v922 = vsel %vm660, %v914, 0.0
        %v923 = vsel %vm661, %v915, 0.0
        %924 = vset.pattern.permute.xlu0 8
        %925 = vperm.xlu0 %924, %v540
        %v926 = vpop.permute.xlu0 %925
        %928 = vset.pattern.permute.xlu0 8
        %929 = vperm.xlu0 %928, %v541
        %v930 = vpop.permute.xlu0 %929
        %v932 = vmul.f32 %v920, %v926
        %v933 = vmul.f32 %v921, %v926
        %v934 = vmul.f32 %v922, %v930
        %v935 = vmul.f32 %v923, %v930
        %v936 = vadd.f32 %v895, %v932
        %v937 = vadd.f32 %v896, %v933
        %v938 = vadd.f32 %v897, %v934
        %v939 = vadd.f32 %v898, %v935
        %v940 = vld [vmem:[%s4] sm:$0xff]
        %v941 = vld [vmem:[%s4 + $0x8] sm:$0xff]
        %943 = vset.pattern.permute.xlu0 0
        %944 = vperm.xlu0 %943, %v940
        %v945 = vpop.permute.xlu0 %944
        %948 = vset.pattern.permute.xlu0 0
        %949 = vperm.xlu0 %948, %v941
        %v950 = vpop.permute.xlu0 %949
        %v952 = vadd.f32 %v936, %v945
        %v953 = vadd.f32 %v937, %v945
        %v954 = vadd.f32 %v938, %v950
        %v955 = vadd.f32 %v939, %v950
        %v956 = vadd.f32 %v952, 3.0
        %v957 = vadd.f32 %v953, 3.0
        %v958 = vadd.f32 %v954, 3.0
        %v959 = vadd.f32 %v955, 3.0
        %v960 = vmax.f32 %v956, 0.0
        %v961 = vmax.f32 %v957, 0.0
        %v962 = vmax.f32 %v958, 0.0
        %v963 = vmax.f32 %v959, 0.0
        %v964 = vmin.f32 %v960, 6.0
        %v965 = vmin.f32 %v961, 6.0
        %v966 = vmin.f32 %v962, 6.0
        %v967 = vmin.f32 %v963, 6.0
        %v968 = vmul.f32 %v964, 0.16666667
        %v969 = vmul.f32 %v965, 0.16666667
        %v970 = vmul.f32 %v966, 0.16666667
        %v971 = vmul.f32 %v967, 0.16666667
        %v972 = vmul.f32 %v952, %v968
        %v973 = vmul.f32 %v953, %v969
        %v974 = vmul.f32 %v954, %v970
        %v975 = vmul.f32 %v955, %v971
        %v976 = vadd.f32 %v972, %v973
        %977 = vadd.xlane.f32.xlu0 %v976
        %v978 = vpop.xlane.xlu0 %977
        %v979 = vadd.f32 %v974, %v975
        %980 = vadd.xlane.f32.xlu0 %v979
        %v981 = vpop.xlane.xlu0 %980
        %v982 = vmul.f32 %v978, 0.00390625
        %v983 = vmul.f32 %v981, 0.00390625
        %v984 = vld [vmem:[%s5] sm:$0xff]
        %v985 = vld [vmem:[%s6] sm:$0xff]
        %v987 = vsel %vm637, %v984, 0
        %989 = vmatprep.subr.mxu0 0.0
        %990 = vmatpush1.msra.mxu0 0.0
        %991 = vmatprep.subr.mxu0 0.0
        %992 = vmatpush1.msra.mxu0 0.0
        %993 = vmatprep.subr.mxu0 0.0
        %994 = vmatpush1.msra.mxu0 0.0
        %995 = vmatprep.subr.mxu0 0.0
        %996 = vmatpush1.msra.mxu0 0.0
        %997 = vmatprep.subr.mxu0 0.0
        %998 = vmatpush1.msra.mxu0 0.0
        %999 = vmatprep.subr.mxu0 0.0
        %1000 = vmatpush1.msra.mxu0 0.0
        %1001 = vmatprep.subr.mxu0 0.0
        %1002 = vmatpush1.msra.mxu0 0.0
        %1003 = vmatprep.subr.mxu0 0.0
        %1004 = vmatpush1.msra.mxu0 0.0
        %1005 = vmatprep.subr.mxu0 0.0
        %1006 = vmatpush1.msra.mxu0 0.0
        %1007 = vmatprep.subr.mxu0 0.0
        %1008 = vmatpush1.msra.mxu0 0.0
        %1009 = vmatprep.subr.mxu0 0.0
        %1010 = vmatpush1.msra.mxu0 0.0
        %1011 = vmatprep.subr.mxu0 0.0
        %1012 = vmatpush1.msra.mxu0 0.0
        %1013 = vmatprep.subr.mxu0 0.0
        %1014 = vmatpush1.msra.mxu0 0.0
        %1015 = vmatprep.subr.mxu0 0.0
        %1016 = vmatpush1.msra.mxu0 0.0
        %1017 = vmatprep.subr.mxu0 0.0
        %1018 = vmatpush1.msra.mxu0 %v983
        %1019 = vmatprep.subr.mxu0 0.0
        %1020 = vmatpush1.msra.mxu0 %v982
        %1021 = vmatprep.subr.mxu0 0.0
        %1022 = vmatpush2.msra.mxu0 0.0
        %1023 = vmatprep.subr.mxu0 0.0
        %1024 = vmatpush2.msra.mxu0 0.0
        %1025 = vmatprep.subr.mxu0 0.0
        %1026 = vmatpush2.msra.mxu0 0.0
        %1027 = vmatprep.subr.mxu0 0.0
        %1028 = vmatpush2.msra.mxu0 0.0
        %1029 = vmatprep.subr.mxu0 0.0
        %1030 = vmatpush2.msra.mxu0 0.0
        %1031 = vmatprep.subr.mxu0 0.0
        %1032 = vmatpush2.msra.mxu0 0.0
        %1033 = vmatprep.subr.mxu0 0.0
        %1034 = vmatpush2.msra.mxu0 0.0
        %1035 = vmatprep.subr.mxu0 0.0
        %1036 = vmatpush2.msra.mxu0 0.0
        %1037 = vmatprep.subr.mxu0 0.0
        %1038 = vmatpush2.msra.mxu0 0.0
        %1039 = vmatprep.subr.mxu0 0.0
        %1040 = vmatpush2.msra.mxu0 0.0
        %1041 = vmatprep.subr.mxu0 0.0
        %1042 = vmatpush2.msra.mxu0 0.0
        %1043 = vmatprep.subr.mxu0 0.0
        %1044 = vmatpush2.msra.mxu0 0.0
        %1045 = vmatprep.subr.mxu0 0.0
        %1046 = vmatpush2.msra.mxu0 0.0
        %1047 = vmatprep.subr.mxu0 0.0
        %1048 = vmatpush2.msra.mxu0 0.0
        %1049 = vmatprep.subr.mxu0 0.0
        %1050 = vmatpush2.msra.mxu0 0.0
        %1051 = vmatprep.subr.mxu0 0.0
        %1052 = vmatpush2.msra.mxu0 0.0
        %1053 = vmatprep.mubr.f32.mxu0 0.0
        %1054 = vmatmul.mubr.f32.gmra.mxu0 %v987
        %v1055 = vpop.f32.mrf.mxu0
        %v1056 = vadd.f32 %v985, %v1055
        %v1057 = vpop.f32.mrf.mxu0
        %1058 = vdwg.mxu0
        %v1059 = vmax.f32 %v1056, 0.0
        %v1060 = vld [vmem:[%s7] sm:$0xff]
        %v1061 = vld [vmem:[%s7 + $0x8] sm:$0xff]
        %v1062 = vld [vmem:[%s8] sm:$0xff]
        %v1063 = vld [vmem:[%s8 + $0x8] sm:$0xff]
        %v1065 = vsel %vm401, %v1060, 0
        %v1068 = vsel %vm401, %v1061, 0
        %1070 = vmatprep.subr.mxu0 0.0
        %1071 = vmatpush1.msra.mxu0 0.0
        %1072 = vmatprep.subr.mxu0 0.0
        %1073 = vmatpush1.msra.mxu0 0.0
        %1074 = vmatprep.subr.mxu0 0.0
        %1075 = vmatpush1.msra.mxu0 0.0
        %1076 = vmatprep.subr.mxu0 0.0
        %1077 = vmatpush1.msra.mxu0 0.0
        %1078 = vmatprep.subr.mxu0 0.0
        %1079 = vmatpush1.msra.mxu0 0.0
        %1080 = vmatprep.subr.mxu0 0.0
        %1081 = vmatpush1.msra.mxu0 0.0
        %1082 = vmatprep.subr.mxu0 0.0
        %1083 = vmatpush1.msra.mxu0 0.0
        %1084 = vmatprep.subr.mxu0 0.0
        %1085 = vmatpush1.msra.mxu0 0.0
        %1086 = vmatprep.subr.mxu0 0.0
        %1087 = vmatpush1.msra.mxu0 0.0
        %1088 = vmatprep.subr.mxu0 0.0
        %1089 = vmatpush1.msra.mxu0 0.0
        %1090 = vmatprep.subr.mxu0 0.0
        %1091 = vmatpush1.msra.mxu0 0.0
        %1092 = vmatprep.subr.mxu0 0.0
        %1093 = vmatpush1.msra.mxu0 0.0
        %1094 = vmatprep.subr.mxu0 0.0
        %1095 = vmatpush1.msra.mxu0 0.0
        %1096 = vmatprep.subr.mxu0 0.0
        %1097 = vmatpush1.msra.mxu0 0.0
        %1098 = vmatprep.subr.mxu0 0.0
        %1099 = vmatpush1.msra.mxu0 0.0
        %1100 = vmatprep.subr.mxu0 0.0
        %1101 = vmatpush1.msra.mxu0 %v1059
        %1102 = vmatprep.subr.mxu0 0.0
        %1103 = vmatpush2.msra.mxu0 0.0
        %1104 = vmatprep.subr.mxu0 0.0
        %1105 = vmatpush2.msra.mxu0 0.0
        %1106 = vmatprep.subr.mxu0 0.0
        %1107 = vmatpush2.msra.mxu0 0.0
        %1108 = vmatprep.subr.mxu0 0.0
        %1109 = vmatpush2.msra.mxu0 0.0
        %1110 = vmatprep.subr.mxu0 0.0
        %1111 = vmatpush2.msra.mxu0 0.0
        %1112 = vmatprep.subr.mxu0 0.0
        %1113 = vmatpush2.msra.mxu0 0.0
        %1114 = vmatprep.subr.mxu0 0.0
        %1115 = vmatpush2.msra.mxu0 0.0
        %1116 = vmatprep.subr.mxu0 0.0
        %1117 = vmatpush2.msra.mxu0 0.0
        %1118 = vmatprep.subr.mxu0 0.0
        %1119 = vmatpush2.msra.mxu0 0.0
        %1120 = vmatprep.subr.mxu0 0.0
        %1121 = vmatpush2.msra.mxu0 0.0
        %1122 = vmatprep.subr.mxu0 0.0
        %1123 = vmatpush2.msra.mxu0 0.0
        %1124 = vmatprep.subr.mxu0 0.0
        %1125 = vmatpush2.msra.mxu0 0.0
        %1126 = vmatprep.subr.mxu0 0.0
        %1127 = vmatpush2.msra.mxu0 0.0
        %1128 = vmatprep.subr.mxu0 0.0
        %1129 = vmatpush2.msra.mxu0 0.0
        %1130 = vmatprep.subr.mxu0 0.0
        %1131 = vmatpush2.msra.mxu0 0.0
        %1132 = vmatprep.subr.mxu0 0.0
        %1133 = vmatpush2.msra.mxu0 0.0
        %1134 = vmatprep.mubr.f32.mxu0 0.0
        %1135 = vmatmul.mubr.f32.gmra.mxu0 %v1065
        %v1136 = vpop.f32.mrf.mxu0
        %v1137 = vadd.f32 %v1062, %v1136
        %v1138 = vpop.f32.mrf.mxu0
        %1139 = vmatprep.mubr.f32.mxu0 0.0
        %1140 = vmatmul.mubr.f32.gmra.mxu0 %v1068
        %v1141 = vpop.f32.mrf.mxu0
        %v1142 = vadd.f32 %v1063, %v1141
        %v1143 = vpop.f32.mrf.mxu0
        %1144 = vdwg.mxu0
        %v1145 = vadd.f32 %v1137, 3.0
        %v1146 = vadd.f32 %v1142, 3.0
        %v1147 = vmax.f32 %v1145, 0.0
        %v1148 = vmax.f32 %v1146, 0.0
        %v1149 = vmin.f32 %v1147, 6.0
        %v1150 = vmin.f32 %v1148, 6.0
        %v1151 = vmul.f32 %v1149, 0.16666667
        %v1152 = vmul.f32 %v1150, 0.16666667
        %v1153 = vmul.f32 %v1137, %v1151
        %v1154 = vmul.f32 %v1142, %v1152
        %1156 = vset.pattern.permute.xlu0 0
        %1157 = vperm.xlu0 %1156, %v1153
        %v1158 = vpop.permute.xlu0 %1157
        %1161 = vset.pattern.permute.xlu0 0
        %1162 = vperm.xlu0 %1161, %v1154
        %v1163 = vpop.permute.xlu0 %1162
        %v1165 = vmul.f32 %v972, %v1158
        %v1166 = vmul.f32 %v973, %v1158
        %v1167 = vmul.f32 %v974, %v1163
        %v1168 = vmul.f32 %v975, %v1163
        %v1169 = vld [vmem:[%s9] sm:$0xff]
        %v1170 = vld [vmem:[%s10] sm:$0xff]
        %1172 = vset.pattern.permute.xlu0 0
        %1173 = vperm.xlu0 %1172, %v1170
        %v1174 = vpop.permute.xlu0 %1173
        %v1177 = vsel %vm637, %v1169, 0
        %1179 = vmatprep.subr.mxu0 0.0
        %1180 = vmatpush1.msra.mxu0 0.0
        %1181 = vmatprep.subr.mxu0 0.0
        %1182 = vmatpush1.msra.mxu0 0.0
        %1183 = vmatprep.subr.mxu0 0.0
        %1184 = vmatpush1.msra.mxu0 0.0
        %1185 = vmatprep.subr.mxu0 0.0
        %1186 = vmatpush1.msra.mxu0 0.0
        %1187 = vmatprep.subr.mxu0 0.0
        %1188 = vmatpush1.msra.mxu0 0.0
        %1189 = vmatprep.subr.mxu0 0.0
        %1190 = vmatpush1.msra.mxu0 0.0
        %1191 = vmatprep.subr.mxu0 0.0
        %1192 = vmatpush1.msra.mxu0 0.0
        %1193 = vmatprep.subr.mxu0 0.0
        %1194 = vmatpush1.msra.mxu0 0.0
        %1195 = vmatprep.subr.mxu0 0.0
        %1196 = vmatpush1.msra.mxu0 0.0
        %1197 = vmatprep.subr.mxu0 0.0
        %1198 = vmatpush1.msra.mxu0 0.0
        %1199 = vmatprep.subr.mxu0 0.0
        %1200 = vmatpush1.msra.mxu0 0.0
        %1201 = vmatprep.subr.mxu0 0.0
        %1202 = vmatpush1.msra.mxu0 0.0
        %1203 = vmatprep.subr.mxu0 0.0
        %1204 = vmatpush1.msra.mxu0 0.0
        %1205 = vmatprep.subr.mxu0 0.0
        %1206 = vmatpush1.msra.mxu0 0.0
        %1207 = vmatprep.subr.mxu0 %v1168
        %1208 = vmatpush1.msra.mxu0 %v1167
        %1209 = vmatprep.subr.mxu0 %v1166
        %1210 = vmatpush1.msra.mxu0 %v1165
        %1211 = vmatprep.subr.mxu0 0.0
        %1212 = vmatpush2.msra.mxu0 0.0
        %1213 = vmatprep.subr.mxu0 0.0
        %1214 = vmatpush2.msra.mxu0 0.0
        %1215 = vmatprep.subr.mxu0 0.0
        %1216 = vmatpush2.msra.mxu0 0.0
        %1217 = vmatprep.subr.mxu0 0.0
        %1218 = vmatpush2.msra.mxu0 0.0
        %1219 = vmatprep.subr.mxu0 0.0
        %1220 = vmatpush2.msra.mxu0 0.0
        %1221 = vmatprep.subr.mxu0 0.0
        %1222 = vmatpush2.msra.mxu0 0.0
        %1223 = vmatprep.subr.mxu0 0.0
        %1224 = vmatpush2.msra.mxu0 0.0
        %1225 = vmatprep.subr.mxu0 0.0
        %1226 = vmatpush2.msra.mxu0 0.0
        %1227 = vmatprep.subr.mxu0 0.0
        %1228 = vmatpush2.msra.mxu0 0.0
        %1229 = vmatprep.subr.mxu0 0.0
        %1230 = vmatpush2.msra.mxu0 0.0
        %1231 = vmatprep.subr.mxu0 0.0
        %1232 = vmatpush2.msra.mxu0 0.0
        %1233 = vmatprep.subr.mxu0 0.0
        %1234 = vmatpush2.msra.mxu0 0.0
        %1235 = vmatprep.subr.mxu0 0.0
        %1236 = vmatpush2.msra.mxu0 0.0
        %1237 = vmatprep.subr.mxu0 0.0
        %1238 = vmatpush2.msra.mxu0 0.0
        %1239 = vmatprep.subr.mxu0 0.0
        %1240 = vmatpush2.msra.mxu0 0.0
        %1241 = vmatprep.subr.mxu0 0.0
        %1242 = vmatpush2.msra.mxu0 0.0
        %1243 = vmatprep.mubr.f32.mxu0 0.0
        %1244 = vmatmul.mubr.f32.gmra.mxu0 %v1177
        %v1245 = vpop.f32.mrf.mxu0
        %v1246 = vadd.f32 %v1174, %v1245
        %v1247 = vpop.f32.mrf.mxu0
        %v1248 = vadd.f32 %v1174, %v1247
        %1249 = vdwg.mxu0
        %v1250 = vadd.f32 %v1246, %v385
        %v1251 = vadd.f32 %v1248, %v386
        %1252 = vst [vmem:[%s379] sm:$0xff] %v1250
        %1253 = vst [vmem:[%s379 + $0x8] sm:$0xff] %v1251
        %s1254 = sand.u32 %s269, 1
        %s1255 = scalar_lea.sflag [#allocation4], %s1254
        %s1256 = sand.u32 %s269, 1
        %s1257 = smul.addr %s1256, 16
        %s1258 = scalar_lea.vmem [#allocation3], %s1257
        // Predicated region
        $region65: #{tpu_custom_call.1} parent=63 // pred_check
          %p1259 = pneg %p279
        $region66: #{tpu_custom_call.1} parent=63 // pred_check_branch
          %1261 = sbr.rel (%p1259) target = $region68
        $region67: #{tpu_custom_call.1} parent=63 // pred_region
          %s1263 = ssub.s32 256, 256
          %1264 = vsyncadd %s1255, %s1263
          %s1265 = smul.addr %s25, 2
          %s1266 = smul.addr %s1265, 128
          %s1267 = scalar_lea.hbm %s11, %s1266
          %s1269 = sshll.u32 %s1258, 4
          %s1270 = int_to_ptr.vmem [resolvable:$true] %s1269
          %1272 = dma.vmem_to_hbm [thread:$0]  %s1270, 256, %s1267, %s1255
        $region68: #{tpu_custom_call.1} parent=63 // pred_fallthru
          _
      $region64: #{tpu_custom_call.1} parent=5 // pred_fallthru
        _
      %p1273 = scmp.le.s32.totalorder 2, %s20
      // Predicated region
      $region69: #{tpu_custom_call.1} parent=5 // pred_check
        %p1274 = pneg %p1273
      $region70: #{tpu_custom_call.1} parent=5 // pred_check_branch
        %1276 = sbr.rel (%p1274) target = $region72
      $region71: #{tpu_custom_call.1} parent=5 // pred_region
        %s1277 = ssub.s32 %s20, 2
        // Predicated region
        $region73: #{tpu_custom_call.1} parent=71 // pred_check
          %p1278 = pneg %p285
        $region74: #{tpu_custom_call.1} parent=71 // pred_check_branch
          %1280 = sbr.rel (%p1278) target = $region76
        $region75: #{tpu_custom_call.1} parent=71 // pred_region
          %s1281 = sand.u32 %s270, 1
          %s1282 = scalar_lea.sflag [#allocation4], %s1281
          %s1283 = sand.u32 %s270, 1
          %s1284 = smul.addr %s1283, 16
          %s1285 = scalar_lea.vmem [#allocation3], %s1284
          %1286 = dma.done %s1282, 256
        $region76: #{tpu_custom_call.1} parent=71 // pred_fallthru
          _
      $region72: #{tpu_custom_call.1} parent=5 // pred_fallthru
        _
    $region6: #{tpu_custom_call.1} parent=1 // loop_footer
      %s24 = sadd.s32 1, %s20
    $region7: #{tpu_custom_call.1} parent=1 // loop_footer_branch
      %19 = sbr.rel target = $region3
    $region8: #{tpu_custom_call.1} parent=1 // loop_exit
      _
    %1287 = vsyncpa [#allocation4], 1
    %s1288 = scalar_lea.sflag [#allocation4], 1
    %1289 = vsyncpa %s1288, 1

</llo_original>
